<compile_context>
chip_gen: v6e
topology: v6e:2x2x1
jax: 0.10.0
libtpu: 0.0.40
codegen_flags: <defaults>
</compile_context>

<pallas_src>
import functools

import jax
import jax.numpy as jnp
from jax.experimental import pallas as pl
from jax.experimental.pallas import tpu as pltpu

NUM_FLOWS = 4
DIM = 16
HALF = DIM // 2
HIDDEN = 32
TWO_H = 2 * HIDDEN

LD_ROW = NUM_FLOWS * DIM          # row where log|det| starts in the output slab
OUT_ROWS = NUM_FLOWS * DIM + 8    # zs rows + 8 (8-sublane-aligned) log-det rows

# dot_general dimension numbers for A @ B^T (contract lhs dim 1 with rhs dim 1)
_NT_DIMS = (((1,), (1,)), ((), ()))


def _round_up(n, mult):
    return ((n + mult - 1) // mult) * mult


# ---------------------------------------------------------------------------
# Kernel (compute is feature-major: operands are (features, batch_tile) so the
# batch sits on the 128-lane axis -> lane-dense VPU/EUP ops and stores)
# ---------------------------------------------------------------------------
def nf_forward_kernel(x_ref, eye_ref,
                      a1_ref, b1_ref, a2_ref, b2_ref, a3_ref, b3_ref,
                      out_ref):
    # x_ref: (TM, DIM) batch-major tile, straight from HBM (no wrapper transpose).
    x_bm = x_ref[...]
    tm = x_bm.shape[0]

    # Feature-major halves via MXU A @ B^T against an identity matrix: the
    # "transpose" happens on the (otherwise idle) MXU instead of in XLA/HBM.
    lo = jax.lax.dot_general(eye_ref[:HALF, :], x_bm, _NT_DIMS,
                             preferred_element_type=jnp.float32)   # (HALF, TM)
    hi = jax.lax.dot_general(eye_ref[HALF:, :], x_bm, _NT_DIMS,
                             preferred_element_type=jnp.float32)   # (HALF, TM)

    ld = jnp.zeros((1, tm), jnp.float32)                           # running log|det J|

    for k in range(NUM_FLOWS):                 # unrolled at trace time
        cond = lo if k % 2 == 0 else hi        # conditioner half
        trans = hi if k % 2 == 0 else lo       # transformed half

        # Fused s/t MLP: [s; t] = A3 @ leaky(A2 @ leaky(A1 @ cond + b1) + b2) + b3
        h = jnp.dot(a1_ref[k], cond, preferred_element_type=jnp.float32) + b1_ref[k]
        h = jnp.maximum(h, 0.01 * h)           # LeakyReLU(0.01): mul+max (2 VPU ops)
        h = jnp.dot(a2_ref[k], h, preferred_element_type=jnp.float32) + b2_ref[k]
        h = jnp.maximum(h, 0.01 * h)
        st = jnp.dot(a3_ref[k], h, preferred_element_type=jnp.float32) + b3_ref[k]
        s = st[:HALF, :]                       # (HALF, TM)
        t = st[HALF:, :]

        new_trans = jnp.exp(s) * trans + t
        if k % 2 == 0:
            hi = new_trans
        else:
            lo = new_trans

        ld = ld + jnp.sum(s, axis=0, keepdims=True)

        base = k * DIM                         # lane-dense, sublane-aligned stores
        out_ref[base:base + HALF, :] = lo
        out_ref[base + HALF:base + DIM, :] = hi

    # log|det J| folded into the same output slab (single DMA stream); broadcast
    # to 8 sublanes so the store uses fully dense vregs (no 1-of-8 masking).
    out_ref[LD_ROW:LD_ROW + 8, :] = jnp.broadcast_to(ld, (8, tm))


# ---------------------------------------------------------------------------
# Wrapper-side weight packing (fuse s- and t-networks per flow into 3 matmuls)
# ---------------------------------------------------------------------------
def pack_params(params):
    sw1, sb1 = params["sw1"], params["sb1"]    # (F, HALF, H), (F, 1, H)
    sw2, sb2 = params["sw2"], params["sb2"]    # (F, H, H),    (F, 1, H)
    sw3, sb3 = params["sw3"], params["sb3"]    # (F, H, HALF), (F, 1, HALF)
    tw1, tb1 = params["tw1"], params["tb1"]
    tw2, tb2 = params["tw2"], params["tb2"]
    tw3, tb3 = params["tw3"], params["tb3"]

    # layer 1: [sw1 | tw1]  -> transposed for feature-major matmul
    a1 = jnp.concatenate([sw1, tw1], axis=-1).transpose(0, 2, 1)    # (F, 2H, HALF)
    b1 = jnp.concatenate([sb1, tb1], axis=-1).transpose(0, 2, 1)    # (F, 2H, 1)

    # layer 2: block-diag([[sw2, 0], [0, tw2]])
    zH = jnp.zeros_like(sw2)
    w2 = jnp.concatenate([jnp.concatenate([sw2, zH], axis=-1),
                          jnp.concatenate([zH, tw2], axis=-1)], axis=1)  # (F, 2H, 2H)
    a2 = w2.transpose(0, 2, 1)                                      # (F, 2H, 2H)
    b2 = jnp.concatenate([sb2, tb2], axis=-1).transpose(0, 2, 1)    # (F, 2H, 1)

    # layer 3: block-diag([[sw3, 0], [0, tw3]])  -> output rows = [s; t]
    zO = jnp.zeros_like(sw3)
    w3 = jnp.concatenate([jnp.concatenate([sw3, zO], axis=-1),
                          jnp.concatenate([zO, tw3], axis=-1)], axis=1)  # (F, 2H, DIM)
    a3 = w3.transpose(0, 2, 1)                                      # (F, DIM, 2H)
    b3 = jnp.concatenate([sb3, tb3], axis=-1).transpose(0, 2, 1)    # (F, DIM, 1)
    return a1, b1, a2, b2, a3, b3


def _pick_tiling(m, tm):
    """Pick a 128-aligned batch tile and padded batch size.

    Ensures >= 2 grid steps whenever the batch allows it so that
    dimension_semantics=("parallel",) can shard the grid across v7x's two
    TensorCores (a no-op on v5e/v6e), and balances tile sizes to keep padding
    small."""
    tm = _round_up(max(int(tm), 128), 128)
    m128 = _round_up(m, 128)
    tm = min(tm, m128)
    n_steps = pl.cdiv(m128, tm)
    if n_steps == 1 and m128 >= 2 * 128:
        n_steps = 2
    tm = _round_up(pl.cdiv(m128, n_steps), 128)
    m_pad = tm * n_steps
    return tm, m_pad


@functools.partial(jax.jit, static_argnames=("tm",))
def _nf_forward_jit(x, params, *, tm=4096):
    m, dim = x.shape
    assert dim == DIM
    a1, b1, a2, b2, a3, b3 = pack_params(params)
    eye = jnp.eye(DIM, dtype=jnp.float32)

    tm_eff, m_pad = _pick_tiling(m, tm)
    grid = (m_pad // tm_eff,)

    xp = x.astype(jnp.float32)
    if m_pad != m:
        xp = jnp.pad(xp, ((0, m_pad - m), (0, 0)))   # padded rows: bias-only flow, finite

    const2 = lambda i: (0, 0)
    const3 = lambda i: (0, 0, 0)
    weights = (a1, b1, a2, b2, a3, b3)

    # 32 MiB is ample at tm<=4096; bump for larger tiles (v5e note in review).
    vmem_limit = (32 if tm_eff <= 4096 else 64) * 1024 * 1024

    out = pl.pallas_call(
        nf_forward_kernel,
        grid=grid,
        in_specs=[pl.BlockSpec((tm_eff, DIM), lambda i: (i, 0)),   # batch-major input tile
                  pl.BlockSpec((DIM, DIM), const2)]                # identity (resident)
                 + [pl.BlockSpec(w.shape, const3) for w in weights],  # weights (resident)
        out_specs=pl.BlockSpec((OUT_ROWS, tm_eff), lambda i: (0, i)),
        out_shape=jax.ShapeDtypeStruct((OUT_ROWS, m_pad), jnp.float32),
        compiler_params=pltpu.CompilerParams(
            dimension_semantics=("parallel",),       # megacore on v7x
            vmem_limit_bytes=vmem_limit,
        ),
    )(xp, eye, *weights)

    log_det = out[LD_ROW, :m]
    # ONE transpose of the whole feature-major zs slab; under jit it fuses with
    # the per-flow slices (single read of the slab, direct writes of outputs).
    zs_all = jnp.transpose(
        out[:NUM_FLOWS * DIM].reshape(NUM_FLOWS, DIM, m_pad), (0, 2, 1))
    zs_rest = [zs_all[k, :m, :] for k in range(NUM_FLOWS)]
    return zs_rest, log_det


def normalizing_flow_forward(x, params, *, tm=4096):
    """Returns (zs, log_det) exactly like NormalizingFlow.forward."""
    zs_rest, log_det = _nf_forward_jit(x, params, tm=int(tm))
    return [x] + list(zs_rest), log_det


# ---------------------------------------------------------------------------
# Parameter init + pure-JAX reference (unfused) for correctness checking
# ---------------------------------------------------------------------------
def init_params(key):
    """Deterministic nn.Linear-style init (U(-1/sqrt(fan_in), 1/sqrt(fan_in)))."""
    def linear(k, fan_in, fan_out, nflows):
        bound = 1.0 / jnp.sqrt(fan_in)
        kw, kb = jax.random.split(k)
        w = jax.random.uniform(kw, (nflows, fan_in, fan_out), jnp.float32,
                               -bound, bound)
        b = jax.random.uniform(kb, (nflows, 1, fan_out), jnp.float32,
                               -bound, bound)
        return w, b

    keys = jax.random.split(key, 6)
    p = {}
    p["sw1"], p["sb1"] = linear(keys[0], HALF, HIDDEN, NUM_FLOWS)
    p["sw2"], p["sb2"] = linear(keys[1], HIDDEN, HIDDEN, NUM_FLOWS)
    p["sw3"], p["sb3"] = linear(keys[2], HIDDEN, HALF, NUM_FLOWS)
    p["tw1"], p["tb1"] = linear(keys[3], HALF, HIDDEN, NUM_FLOWS)
    p["tw2"], p["tb2"] = linear(keys[4], HIDDEN, HIDDEN, NUM_FLOWS)
    p["tw3"], p["tb3"] = linear(keys[5], HIDDEN, HALF, NUM_FLOWS)
    return p


def _mlp(inp, w1, b1, w2, b2, w3, b3):
    h = jnp.dot(inp, w1, preferred_element_type=jnp.float32) + b1
    h = jnp.where(h > 0, h, 0.01 * h)
    h = jnp.dot(h, w2, preferred_element_type=jnp.float32) + b2
    h = jnp.where(h > 0, h, 0.01 * h)
    return jnp.dot(h, w3, preferred_element_type=jnp.float32) + b3


def reference_forward(x, params):
    m = x.shape[0]
    log_det = jnp.zeros((m,), jnp.float32)
    zs = [x]
    for k in range(NUM_FLOWS):
        parity = k % 2
        if parity == 0:
            x0, x1 = x[:, :HALF], x[:, HALF:]
        else:
            x0, x1 = x[:, HALF:], x[:, :HALF]
        s = _mlp(x0, params["sw1"][k], params["sb1"][k], params["sw2"][k],
                 params["sb2"][k], params["sw3"][k], params["sb3"][k])
        t = _mlp(x0, params["tw1"][k], params["tb1"][k], params["tw2"][k],
                 params["tb2"][k], params["tw3"][k], params["tb3"][k])
        z1 = jnp.exp(s) * x1 + t
        x = jnp.concatenate([x0, z1] if parity == 0 else [z1, x0], axis=1)
        log_det = log_det + jnp.sum(s, axis=1)
        zs.append(x)
    return zs, log_det


if __name__ == "__main__":
    key = jax.random.PRNGKey(0)
    kx, kp, kx2 = jax.random.split(key, 3)
    params = init_params(kp)

    # --- small demo batch (single grid step) ------------------------------
    m = 8
    x = jax.random.normal(kx, (m, DIM), jnp.float32)
    zs, log_det = normalizing_flow_forward(x, params)
    jax.block_until_ready((zs, log_det))

    zs_ref, ld_ref = reference_forward(x, params)
    for a, b in zip(zs, zs_ref):
        assert jnp.allclose(a, b, atol=1e-3, rtol=1e-3)
    assert jnp.allclose(log_det, ld_ref, atol=1e-3, rtol=1e-3)
    assert log_det.shape == (m,)
    assert len(zs) == NUM_FLOWS + 1

    # --- larger batch: exercises padding, the multi-step grid and the ------
    # --- v7x two-TensorCore split of the "parallel" axis --------------------
    m2 = 1000
    x2 = jax.random.normal(kx2, (m2, DIM), jnp.float32)
    zs2, ld2 = normalizing_flow_forward(x2, params)
    jax.block_until_ready((zs2, ld2))

    zs2_ref, ld2_ref = reference_forward(x2, params)
    for a, b in zip(zs2, zs2_ref):
        assert jnp.allclose(a, b, atol=1e-3, rtol=1e-3)
    assert jnp.allclose(ld2, ld2_ref, atol=1e-3, rtol=1e-3)
    assert ld2.shape == (m2,)
    assert len(zs2) == NUM_FLOWS + 1

    print("KERNEL_OK")
</pallas_src>

<mosaic_0001>
module attributes {stable_mosaic.version = 11 : i64} {
  func.func @nf_forward_kernel(%arg0: i32, %arg1: memref<128x16xf32, #tpu.memory_space<vmem>>, %arg2: memref<16x16xf32, #tpu.memory_space<vmem>>, %arg3: memref<4x64x8xf32, #tpu.memory_space<vmem>>, %arg4: memref<4x64x1xf32, #tpu.memory_space<vmem>>, %arg5: memref<4x64x64xf32, #tpu.memory_space<vmem>>, %arg6: memref<4x64x1xf32, #tpu.memory_space<vmem>>, %arg7: memref<4x16x64xf32, #tpu.memory_space<vmem>>, %arg8: memref<4x16x1xf32, #tpu.memory_space<vmem>>, %arg9: memref<72x128xf32, #tpu.memory_space<vmem>>) attributes {dimension_semantics = [#tpu.dimension_semantics<parallel>], iteration_bounds = array<i64: 1>, scalar_prefetch = 0 : i64, scratch_operands = 0 : i64, tpu.core_type = #tpu.core_type<tc>, window_params = [{transform_indices = @transform_0, window_bounds = array<i64: 128, 16>}, {pipeline_mode = #tpu.pipeline_mode<synchronous>, transform_indices = @transform_1, window_bounds = array<i64: 16, 16>}, {pipeline_mode = #tpu.pipeline_mode<synchronous>, transform_indices = @transform_2, window_bounds = array<i64: 4, 64, 8>}, {pipeline_mode = #tpu.pipeline_mode<synchronous>, transform_indices = @transform_3, window_bounds = array<i64: 4, 64, 1>}, {pipeline_mode = #tpu.pipeline_mode<synchronous>, transform_indices = @transform_4, window_bounds = array<i64: 4, 64, 64>}, {pipeline_mode = #tpu.pipeline_mode<synchronous>, transform_indices = @transform_5, window_bounds = array<i64: 4, 64, 1>}, {pipeline_mode = #tpu.pipeline_mode<synchronous>, transform_indices = @transform_6, window_bounds = array<i64: 4, 16, 64>}, {pipeline_mode = #tpu.pipeline_mode<synchronous>, transform_indices = @transform_7, window_bounds = array<i64: 4, 16, 1>}, {transform_indices = @transform_8, window_bounds = array<i64: 72, 128>}]} {
    %c0 = arith.constant 0 : index
    %c0_0 = arith.constant 0 : index
    %0 = vector.load %arg1[%c0, %c0_0] : memref<128x16xf32, #tpu.memory_space<vmem>>, vector<128x16xf32>
    %c0_1 = arith.constant 0 : index
    %c0_2 = arith.constant 0 : index
    %1 = vector.load %arg2[%c0_1, %c0_2] : memref<16x16xf32, #tpu.memory_space<vmem>>, vector<8x16xf32>
    %cst = arith.constant dense<0.000000e+00> : vector<8x128xf32>
    %2 = tpu.matmul %1, %0, %cst {dimension_numbers = #tpu.dot_dimension_numbers<[1], [1], [0], [0], [0, 0, 1, 0], [], []>} : vector<8x16xf32>, vector<128x16xf32>, vector<8x128xf32> -> vector<8x128xf32>
    %c8 = arith.constant 8 : index
    %c0_3 = arith.constant 0 : index
    %3 = vector.load %arg2[%c8, %c0_3] : memref<16x16xf32, #tpu.memory_space<vmem>>, vector<8x16xf32>
    %cst_4 = arith.constant dense<0.000000e+00> : vector<8x128xf32>
    %4 = tpu.matmul %3, %0, %cst_4 {dimension_numbers = #tpu.dot_dimension_numbers<[1], [1], [0], [0], [0, 0, 1, 0], [], []>} : vector<8x16xf32>, vector<128x16xf32>, vector<8x128xf32> -> vector<8x128xf32>
    %cst_5 = arith.constant 0.000000e+00 : f32
    %5 = vector.broadcast %cst_5 : f32 to vector<1x128xf32>
    %c0_6 = arith.constant 0 : index
    %c0_7 = arith.constant 0 : index
    %c0_8 = arith.constant 0 : index
    %6 = vector.load %arg3[%c0_6, %c0_7, %c0_8] : memref<4x64x8xf32, #tpu.memory_space<vmem>>, vector<1x64x8xf32>
    %7 = vector.shape_cast %6 : vector<1x64x8xf32> to vector<64x8xf32>
    %cst_9 = arith.constant dense<0.000000e+00> : vector<64x128xf32>
    %8 = tpu.matmul %7, %2, %cst_9 {dimension_numbers = #tpu.dot_dimension_numbers<[1], [0], [0], [1], [0, 0, 1, 1], [], []>} : vector<64x8xf32>, vector<8x128xf32>, vector<64x128xf32> -> vector<64x128xf32>
    %c0_10 = arith.constant 0 : index
    %c0_11 = arith.constant 0 : index
    %c0_12 = arith.constant 0 : index
    %9 = vector.load %arg4[%c0_10, %c0_11, %c0_12] : memref<4x64x1xf32, #tpu.memory_space<vmem>>, vector<1x64x1xf32>
    %10 = vector.shape_cast %9 : vector<1x64x1xf32> to vector<64x1xf32>
    %11 = vector.broadcast %10 : vector<64x1xf32> to vector<64x128xf32>
    %12 = arith.addf %8, %11 : vector<64x128xf32>
    %cst_13 = arith.constant 0.00999999977 : f32
    %13 = vector.broadcast %cst_13 : f32 to vector<64x128xf32>
    %14 = arith.mulf %13, %12 : vector<64x128xf32>
    %15 = arith.maximumf %12, %14 : vector<64x128xf32>
    %c0_14 = arith.constant 0 : index
    %c0_15 = arith.constant 0 : index
    %c0_16 = arith.constant 0 : index
    %16 = vector.load %arg5[%c0_14, %c0_15, %c0_16] : memref<4x64x64xf32, #tpu.memory_space<vmem>>, vector<1x64x64xf32>
    %17 = vector.shape_cast %16 : vector<1x64x64xf32> to vector<64x64xf32>
    %cst_17 = arith.constant dense<0.000000e+00> : vector<64x128xf32>
    %18 = tpu.matmul %17, %15, %cst_17 {dimension_numbers = #tpu.dot_dimension_numbers<[1], [0], [0], [1], [0, 0, 1, 1], [], []>} : vector<64x64xf32>, vector<64x128xf32>, vector<64x128xf32> -> vector<64x128xf32>
    %c0_18 = arith.constant 0 : index
    %c0_19 = arith.constant 0 : index
    %c0_20 = arith.constant 0 : index
    %19 = vector.load %arg6[%c0_18, %c0_19, %c0_20] : memref<4x64x1xf32, #tpu.memory_space<vmem>>, vector<1x64x1xf32>
    %20 = vector.shape_cast %19 : vector<1x64x1xf32> to vector<64x1xf32>
    %21 = vector.broadcast %20 : vector<64x1xf32> to vector<64x128xf32>
    %22 = arith.addf %18, %21 : vector<64x128xf32>
    %cst_21 = arith.constant 0.00999999977 : f32
    %23 = vector.broadcast %cst_21 : f32 to vector<64x128xf32>
    %24 = arith.mulf %23, %22 : vector<64x128xf32>
    %25 = arith.maximumf %22, %24 : vector<64x128xf32>
    %c0_22 = arith.constant 0 : index
    %c0_23 = arith.constant 0 : index
    %c0_24 = arith.constant 0 : index
    %26 = vector.load %arg7[%c0_22, %c0_23, %c0_24] : memref<4x16x64xf32, #tpu.memory_space<vmem>>, vector<1x16x64xf32>
    %27 = vector.shape_cast %26 : vector<1x16x64xf32> to vector<16x64xf32>
    %cst_25 = arith.constant dense<0.000000e+00> : vector<16x128xf32>
    %28 = tpu.matmul %27, %25, %cst_25 {dimension_numbers = #tpu.dot_dimension_numbers<[1], [0], [0], [1], [0, 0, 1, 1], [], []>} : vector<16x64xf32>, vector<64x128xf32>, vector<16x128xf32> -> vector<16x128xf32>
    %c0_26 = arith.constant 0 : index
    %c0_27 = arith.constant 0 : index
    %c0_28 = arith.constant 0 : index
    %29 = vector.load %arg8[%c0_26, %c0_27, %c0_28] : memref<4x16x1xf32, #tpu.memory_space<vmem>>, vector<1x16x1xf32>
    %30 = vector.shape_cast %29 : vector<1x16x1xf32> to vector<16x1xf32>
    %31 = vector.broadcast %30 : vector<16x1xf32> to vector<16x128xf32>
    %32 = arith.addf %28, %31 : vector<16x128xf32>
    %33 = vector.extract_strided_slice %32 {offsets = [0, 0], sizes = [8, 128], strides = [1, 1]} : vector<16x128xf32> to vector<8x128xf32>
    %34 = vector.extract_strided_slice %32 {offsets = [8, 0], sizes = [8, 128], strides = [1, 1]} : vector<16x128xf32> to vector<8x128xf32>
    %35 = math.exp %33 : vector<8x128xf32>
    %36 = arith.mulf %35, %4 : vector<8x128xf32>
    %37 = arith.addf %36, %34 : vector<8x128xf32>
    %cst_29 = arith.constant dense<0.000000e+00> : vector<128xf32>
    %38 = vector.multi_reduction <add>, %33, %cst_29 [0] : vector<8x128xf32> to vector<128xf32>
    %39 = vector.shape_cast %38 : vector<128xf32> to vector<1x128xf32>
    %40 = arith.addf %5, %39 : vector<1x128xf32>
    %c0_30 = arith.constant 0 : index
    %c0_31 = arith.constant 0 : index
    %41 = vector.load %arg9[%c0_30, %c0_31] : memref<72x128xf32, #tpu.memory_space<vmem>>, vector<8x128xf32>
    tpu.vector_store %arg9[%c0_30, %c0_31], %2 {strides = array<i32>} : memref<72x128xf32, #tpu.memory_space<vmem>>, vector<8x128xf32>,
    %c8_32 = arith.constant 8 : index
    %c0_33 = arith.constant 0 : index
    %42 = vector.load %arg9[%c8_32, %c0_33] : memref<72x128xf32, #tpu.memory_space<vmem>>, vector<8x128xf32>
    tpu.vector_store %arg9[%c8_32, %c0_33], %37 {strides = array<i32>} : memref<72x128xf32, #tpu.memory_space<vmem>>, vector<8x128xf32>,
    %c1 = arith.constant 1 : index
    %c0_34 = arith.constant 0 : index
    %c0_35 = arith.constant 0 : index
    %43 = vector.load %arg3[%c1, %c0_34, %c0_35] : memref<4x64x8xf32, #tpu.memory_space<vmem>>, vector<1x64x8xf32>
    %44 = vector.shape_cast %43 : vector<1x64x8xf32> to vector<64x8xf32>
    %cst_36 = arith.constant dense<0.000000e+00> : vector<64x128xf32>
    %45 = tpu.matmul %44, %37, %cst_36 {dimension_numbers = #tpu.dot_dimension_numbers<[1], [0], [0], [1], [0, 0, 1, 1], [], []>} : vector<64x8xf32>, vector<8x128xf32>, vector<64x128xf32> -> vector<64x128xf32>
    %c1_37 = arith.constant 1 : index
    %c0_38 = arith.constant 0 : index
    %c0_39 = arith.constant 0 : index
    %46 = vector.load %arg4[%c1_37, %c0_38, %c0_39] : memref<4x64x1xf32, #tpu.memory_space<vmem>>, vector<1x64x1xf32>
    %47 = vector.shape_cast %46 : vector<1x64x1xf32> to vector<64x1xf32>
    %48 = vector.broadcast %47 : vector<64x1xf32> to vector<64x128xf32>
    %49 = arith.addf %45, %48 : vector<64x128xf32>
    %cst_40 = arith.constant 0.00999999977 : f32
    %50 = vector.broadcast %cst_40 : f32 to vector<64x128xf32>
    %51 = arith.mulf %50, %49 : vector<64x128xf32>
    %52 = arith.maximumf %49, %51 : vector<64x128xf32>
    %c1_41 = arith.constant 1 : index
    %c0_42 = arith.constant 0 : index
    %c0_43 = arith.constant 0 : index
    %53 = vector.load %arg5[%c1_41, %c0_42, %c0_43] : memref<4x64x64xf32, #tpu.memory_space<vmem>>, vector<1x64x64xf32>
    %54 = vector.shape_cast %53 : vector<1x64x64xf32> to vector<64x64xf32>
    %cst_44 = arith.constant dense<0.000000e+00> : vector<64x128xf32>
    %55 = tpu.matmul %54, %52, %cst_44 {dimension_numbers = #tpu.dot_dimension_numbers<[1], [0], [0], [1], [0, 0, 1, 1], [], []>} : vector<64x64xf32>, vector<64x128xf32>, vector<64x128xf32> -> vector<64x128xf32>
    %c1_45 = arith.constant 1 : index
    %c0_46 = arith.constant 0 : index
    %c0_47 = arith.constant 0 : index
    %56 = vector.load %arg6[%c1_45, %c0_46, %c0_47] : memref<4x64x1xf32, #tpu.memory_space<vmem>>, vector<1x64x1xf32>
    %57 = vector.shape_cast %56 : vector<1x64x1xf32> to vector<64x1xf32>
    %58 = vector.broadcast %57 : vector<64x1xf32> to vector<64x128xf32>
    %59 = arith.addf %55, %58 : vector<64x128xf32>
    %cst_48 = arith.constant 0.00999999977 : f32
    %60 = vector.broadcast %cst_48 : f32 to vector<64x128xf32>
    %61 = arith.mulf %60, %59 : vector<64x128xf32>
    %62 = arith.maximumf %59, %61 : vector<64x128xf32>
    %c1_49 = arith.constant 1 : index
    %c0_50 = arith.constant 0 : index
    %c0_51 = arith.constant 0 : index
    %63 = vector.load %arg7[%c1_49, %c0_50, %c0_51] : memref<4x16x64xf32, #tpu.memory_space<vmem>>, vector<1x16x64xf32>
    %64 = vector.shape_cast %63 : vector<1x16x64xf32> to vector<16x64xf32>
    %cst_52 = arith.constant dense<0.000000e+00> : vector<16x128xf32>
    %65 = tpu.matmul %64, %62, %cst_52 {dimension_numbers = #tpu.dot_dimension_numbers<[1], [0], [0], [1], [0, 0, 1, 1], [], []>} : vector<16x64xf32>, vector<64x128xf32>, vector<16x128xf32> -> vector<16x128xf32>
    %c1_53 = arith.constant 1 : index
    %c0_54 = arith.constant 0 : index
    %c0_55 = arith.constant 0 : index
    %66 = vector.load %arg8[%c1_53, %c0_54, %c0_55] : memref<4x16x1xf32, #tpu.memory_space<vmem>>, vector<1x16x1xf32>
    %67 = vector.shape_cast %66 : vector<1x16x1xf32> to vector<16x1xf32>
    %68 = vector.broadcast %67 : vector<16x1xf32> to vector<16x128xf32>
    %69 = arith.addf %65, %68 : vector<16x128xf32>
    %70 = vector.extract_strided_slice %69 {offsets = [0, 0], sizes = [8, 128], strides = [1, 1]} : vector<16x128xf32> to vector<8x128xf32>
    %71 = vector.extract_strided_slice %69 {offsets = [8, 0], sizes = [8, 128], strides = [1, 1]} : vector<16x128xf32> to vector<8x128xf32>
    %72 = math.exp %70 : vector<8x128xf32>
    %73 = arith.mulf %72, %2 : vector<8x128xf32>
    %74 = arith.addf %73, %71 : vector<8x128xf32>
    %cst_56 = arith.constant dense<0.000000e+00> : vector<128xf32>
    %75 = vector.multi_reduction <add>, %70, %cst_56 [0] : vector<8x128xf32> to vector<128xf32>
    %76 = vector.shape_cast %75 : vector<128xf32> to vector<1x128xf32>
    %77 = arith.addf %40, %76 : vector<1x128xf32>
    %c16 = arith.constant 16 : index
    %c0_57 = arith.constant 0 : index
    %78 = vector.load %arg9[%c16, %c0_57] : memref<72x128xf32, #tpu.memory_space<vmem>>, vector<8x128xf32>
    tpu.vector_store %arg9[%c16, %c0_57], %74 {strides = array<i32>} : memref<72x128xf32, #tpu.memory_space<vmem>>, vector<8x128xf32>,
    %c24 = arith.constant 24 : index
    %c0_58 = arith.constant 0 : index
    %79 = vector.load %arg9[%c24, %c0_58] : memref<72x128xf32, #tpu.memory_space<vmem>>, vector<8x128xf32>
    tpu.vector_store %arg9[%c24, %c0_58], %37 {strides = array<i32>} : memref<72x128xf32, #tpu.memory_space<vmem>>, vector<8x128xf32>,
    %c2 = arith.constant 2 : index
    %c0_59 = arith.constant 0 : index
    %c0_60 = arith.constant 0 : index
    %80 = vector.load %arg3[%c2, %c0_59, %c0_60] : memref<4x64x8xf32, #tpu.memory_space<vmem>>, vector<1x64x8xf32>
    %81 = vector.shape_cast %80 : vector<1x64x8xf32> to vector<64x8xf32>
    %cst_61 = arith.constant dense<0.000000e+00> : vector<64x128xf32>
    %82 = tpu.matmul %81, %74, %cst_61 {dimension_numbers = #tpu.dot_dimension_numbers<[1], [0], [0], [1], [0, 0, 1, 1], [], []>} : vector<64x8xf32>, vector<8x128xf32>, vector<64x128xf32> -> vector<64x128xf32>
    %c2_62 = arith.constant 2 : index
    %c0_63 = arith.constant 0 : index
    %c0_64 = arith.constant 0 : index
    %83 = vector.load %arg4[%c2_62, %c0_63, %c0_64] : memref<4x64x1xf32, #tpu.memory_space<vmem>>, vector<1x64x1xf32>
    %84 = vector.shape_cast %83 : vector<1x64x1xf32> to vector<64x1xf32>
    %85 = vector.broadcast %84 : vector<64x1xf32> to vector<64x128xf32>
    %86 = arith.addf %82, %85 : vector<64x128xf32>
    %cst_65 = arith.constant 0.00999999977 : f32
    %87 = vector.broadcast %cst_65 : f32 to vector<64x128xf32>
    %88 = arith.mulf %87, %86 : vector<64x128xf32>
    %89 = arith.maximumf %86, %88 : vector<64x128xf32>
    %c2_66 = arith.constant 2 : index
    %c0_67 = arith.constant 0 : index
    %c0_68 = arith.constant 0 : index
    %90 = vector.load %arg5[%c2_66, %c0_67, %c0_68] : memref<4x64x64xf32, #tpu.memory_space<vmem>>, vector<1x64x64xf32>
    %91 = vector.shape_cast %90 : vector<1x64x64xf32> to vector<64x64xf32>
    %cst_69 = arith.constant dense<0.000000e+00> : vector<64x128xf32>
    %92 = tpu.matmul %91, %89, %cst_69 {dimension_numbers = #tpu.dot_dimension_numbers<[1], [0], [0], [1], [0, 0, 1, 1], [], []>} : vector<64x64xf32>, vector<64x128xf32>, vector<64x128xf32> -> vector<64x128xf32>
    %c2_70 = arith.constant 2 : index
    %c0_71 = arith.constant 0 : index
    %c0_72 = arith.constant 0 : index
    %93 = vector.load %arg6[%c2_70, %c0_71, %c0_72] : memref<4x64x1xf32, #tpu.memory_space<vmem>>, vector<1x64x1xf32>
    %94 = vector.shape_cast %93 : vector<1x64x1xf32> to vector<64x1xf32>
    %95 = vector.broadcast %94 : vector<64x1xf32> to vector<64x128xf32>
    %96 = arith.addf %92, %95 : vector<64x128xf32>
    %cst_73 = arith.constant 0.00999999977 : f32
    %97 = vector.broadcast %cst_73 : f32 to vector<64x128xf32>
    %98 = arith.mulf %97, %96 : vector<64x128xf32>
    %99 = arith.maximumf %96, %98 : vector<64x128xf32>
    %c2_74 = arith.constant 2 : index
    %c0_75 = arith.constant 0 : index
    %c0_76 = arith.constant 0 : index
    %100 = vector.load %arg7[%c2_74, %c0_75, %c0_76] : memref<4x16x64xf32, #tpu.memory_space<vmem>>, vector<1x16x64xf32>
    %101 = vector.shape_cast %100 : vector<1x16x64xf32> to vector<16x64xf32>
    %cst_77 = arith.constant dense<0.000000e+00> : vector<16x128xf32>
    %102 = tpu.matmul %101, %99, %cst_77 {dimension_numbers = #tpu.dot_dimension_numbers<[1], [0], [0], [1], [0, 0, 1, 1], [], []>} : vector<16x64xf32>, vector<64x128xf32>, vector<16x128xf32> -> vector<16x128xf32>
    %c2_78 = arith.constant 2 : index
    %c0_79 = arith.constant 0 : index
    %c0_80 = arith.constant 0 : index
    %103 = vector.load %arg8[%c2_78, %c0_79, %c0_80] : memref<4x16x1xf32, #tpu.memory_space<vmem>>, vector<1x16x1xf32>
    %104 = vector.shape_cast %103 : vector<1x16x1xf32> to vector<16x1xf32>
    %105 = vector.broadcast %104 : vector<16x1xf32> to vector<16x128xf32>
    %106 = arith.addf %102, %105 : vector<16x128xf32>
    %107 = vector.extract_strided_slice %106 {offsets = [0, 0], sizes = [8, 128], strides = [1, 1]} : vector<16x128xf32> to vector<8x128xf32>
    %108 = vector.extract_strided_slice %106 {offsets = [8, 0], sizes = [8, 128], strides = [1, 1]} : vector<16x128xf32> to vector<8x128xf32>
    %109 = math.exp %107 : vector<8x128xf32>
    %110 = arith.mulf %109, %37 : vector<8x128xf32>
    %111 = arith.addf %110, %108 : vector<8x128xf32>
    %cst_81 = arith.constant dense<0.000000e+00> : vector<128xf32>
    %112 = vector.multi_reduction <add>, %107, %cst_81 [0] : vector<8x128xf32> to vector<128xf32>
    %113 = vector.shape_cast %112 : vector<128xf32> to vector<1x128xf32>
    %114 = arith.addf %77, %113 : vector<1x128xf32>
    %c32 = arith.constant 32 : index
    %c0_82 = arith.constant 0 : index
    %115 = vector.load %arg9[%c32, %c0_82] : memref<72x128xf32, #tpu.memory_space<vmem>>, vector<8x128xf32>
    tpu.vector_store %arg9[%c32, %c0_82], %74 {strides = array<i32>} : memref<72x128xf32, #tpu.memory_space<vmem>>, vector<8x128xf32>,
    %c40 = arith.constant 40 : index
    %c0_83 = arith.constant 0 : index
    %116 = vector.load %arg9[%c40, %c0_83] : memref<72x128xf32, #tpu.memory_space<vmem>>, vector<8x128xf32>
    tpu.vector_store %arg9[%c40, %c0_83], %111 {strides = array<i32>} : memref<72x128xf32, #tpu.memory_space<vmem>>, vector<8x128xf32>,
    %c3 = arith.constant 3 : index
    %c0_84 = arith.constant 0 : index
    %c0_85 = arith.constant 0 : index
    %117 = vector.load %arg3[%c3, %c0_84, %c0_85] : memref<4x64x8xf32, #tpu.memory_space<vmem>>, vector<1x64x8xf32>
    %118 = vector.shape_cast %117 : vector<1x64x8xf32> to vector<64x8xf32>
    %cst_86 = arith.constant dense<0.000000e+00> : vector<64x128xf32>
    %119 = tpu.matmul %118, %111, %cst_86 {dimension_numbers = #tpu.dot_dimension_numbers<[1], [0], [0], [1], [0, 0, 1, 1], [], []>} : vector<64x8xf32>, vector<8x128xf32>, vector<64x128xf32> -> vector<64x128xf32>
    %c3_87 = arith.constant 3 : index
    %c0_88 = arith.constant 0 : index
    %c0_89 = arith.constant 0 : index
    %120 = vector.load %arg4[%c3_87, %c0_88, %c0_89] : memref<4x64x1xf32, #tpu.memory_space<vmem>>, vector<1x64x1xf32>
    %121 = vector.shape_cast %120 : vector<1x64x1xf32> to vector<64x1xf32>
    %122 = vector.broadcast %121 : vector<64x1xf32> to vector<64x128xf32>
    %123 = arith.addf %119, %122 : vector<64x128xf32>
    %cst_90 = arith.constant 0.00999999977 : f32
    %124 = vector.broadcast %cst_90 : f32 to vector<64x128xf32>
    %125 = arith.mulf %124, %123 : vector<64x128xf32>
    %126 = arith.maximumf %123, %125 : vector<64x128xf32>
    %c3_91 = arith.constant 3 : index
    %c0_92 = arith.constant 0 : index
    %c0_93 = arith.constant 0 : index
    %127 = vector.load %arg5[%c3_91, %c0_92, %c0_93] : memref<4x64x64xf32, #tpu.memory_space<vmem>>, vector<1x64x64xf32>
    %128 = vector.shape_cast %127 : vector<1x64x64xf32> to vector<64x64xf32>
    %cst_94 = arith.constant dense<0.000000e+00> : vector<64x128xf32>
    %129 = tpu.matmul %128, %126, %cst_94 {dimension_numbers = #tpu.dot_dimension_numbers<[1], [0], [0], [1], [0, 0, 1, 1], [], []>} : vector<64x64xf32>, vector<64x128xf32>, vector<64x128xf32> -> vector<64x128xf32>
    %c3_95 = arith.constant 3 : index
    %c0_96 = arith.constant 0 : index
    %c0_97 = arith.constant 0 : index
    %130 = vector.load %arg6[%c3_95, %c0_96, %c0_97] : memref<4x64x1xf32, #tpu.memory_space<vmem>>, vector<1x64x1xf32>
    %131 = vector.shape_cast %130 : vector<1x64x1xf32> to vector<64x1xf32>
    %132 = vector.broadcast %131 : vector<64x1xf32> to vector<64x128xf32>
    %133 = arith.addf %129, %132 : vector<64x128xf32>
    %cst_98 = arith.constant 0.00999999977 : f32
    %134 = vector.broadcast %cst_98 : f32 to vector<64x128xf32>
    %135 = arith.mulf %134, %133 : vector<64x128xf32>
    %136 = arith.maximumf %133, %135 : vector<64x128xf32>
    %c3_99 = arith.constant 3 : index
    %c0_100 = arith.constant 0 : index
    %c0_101 = arith.constant 0 : index
    %137 = vector.load %arg7[%c3_99, %c0_100, %c0_101] : memref<4x16x64xf32, #tpu.memory_space<vmem>>, vector<1x16x64xf32>
    %138 = vector.shape_cast %137 : vector<1x16x64xf32> to vector<16x64xf32>
    %cst_102 = arith.constant dense<0.000000e+00> : vector<16x128xf32>
    %139 = tpu.matmul %138, %136, %cst_102 {dimension_numbers = #tpu.dot_dimension_numbers<[1], [0], [0], [1], [0, 0, 1, 1], [], []>} : vector<16x64xf32>, vector<64x128xf32>, vector<16x128xf32> -> vector<16x128xf32>
    %c3_103 = arith.constant 3 : index
    %c0_104 = arith.constant 0 : index
    %c0_105 = arith.constant 0 : index
    %140 = vector.load %arg8[%c3_103, %c0_104, %c0_105] : memref<4x16x1xf32, #tpu.memory_space<vmem>>, vector<1x16x1xf32>
    %141 = vector.shape_cast %140 : vector<1x16x1xf32> to vector<16x1xf32>
    %142 = vector.broadcast %141 : vector<16x1xf32> to vector<16x128xf32>
    %143 = arith.addf %139, %142 : vector<16x128xf32>
    %144 = vector.extract_strided_slice %143 {offsets = [0, 0], sizes = [8, 128], strides = [1, 1]} : vector<16x128xf32> to vector<8x128xf32>
    %145 = vector.extract_strided_slice %143 {offsets = [8, 0], sizes = [8, 128], strides = [1, 1]} : vector<16x128xf32> to vector<8x128xf32>
    %146 = math.exp %144 : vector<8x128xf32>
    %147 = arith.mulf %146, %74 : vector<8x128xf32>
    %148 = arith.addf %147, %145 : vector<8x128xf32>
    %cst_106 = arith.constant dense<0.000000e+00> : vector<128xf32>
    %149 = vector.multi_reduction <add>, %144, %cst_106 [0] : vector<8x128xf32> to vector<128xf32>
    %150 = vector.shape_cast %149 : vector<128xf32> to vector<1x128xf32>
    %151 = arith.addf %114, %150 : vector<1x128xf32>
    %c48 = arith.constant 48 : index
    %c0_107 = arith.constant 0 : index
    %152 = vector.load %arg9[%c48, %c0_107] : memref<72x128xf32, #tpu.memory_space<vmem>>, vector<8x128xf32>
    tpu.vector_store %arg9[%c48, %c0_107], %148 {strides = array<i32>} : memref<72x128xf32, #tpu.memory_space<vmem>>, vector<8x128xf32>,
    %c56 = arith.constant 56 : index
    %c0_108 = arith.constant 0 : index
    %153 = vector.load %arg9[%c56, %c0_108] : memref<72x128xf32, #tpu.memory_space<vmem>>, vector<8x128xf32>
    tpu.vector_store %arg9[%c56, %c0_108], %111 {strides = array<i32>} : memref<72x128xf32, #tpu.memory_space<vmem>>, vector<8x128xf32>,
    %154 = vector.shape_cast %151 : vector<1x128xf32> to vector<1x128xf32>
    %155 = vector.broadcast %154 : vector<1x128xf32> to vector<8x128xf32>
    %c64 = arith.constant 64 : index
    %c0_109 = arith.constant 0 : index
    %156 = vector.load %arg9[%c64, %c0_109] : memref<72x128xf32, #tpu.memory_space<vmem>>, vector<8x128xf32>
    tpu.vector_store %arg9[%c64, %c0_109], %155 {strides = array<i32>} : memref<72x128xf32, #tpu.memory_space<vmem>>, vector<8x128xf32>,
    return
  }
  func.func @transform_0(%arg0: i32) -> (i32, i32) {
    %c0_i32 = arith.constant 0 : i32
    %c0_i32_0 = arith.constant 0 : i32
    return %arg0, %c0_i32 : i32, i32
  }
  func.func @transform_1(%arg0: i32) -> (i32, i32) {
    %c0_i32 = arith.constant 0 : i32
    %c0_i32_0 = arith.constant 0 : i32
    %c0_i32_1 = arith.constant 0 : i32
    return %c0_i32, %c0_i32_0 : i32, i32
  }
  func.func @transform_2(%arg0: i32) -> (i32, i32, i32) {
    %c0_i32 = arith.constant 0 : i32
    %c0_i32_0 = arith.constant 0 : i32
    %c0_i32_1 = arith.constant 0 : i32
    %c0_i32_2 = arith.constant 0 : i32
    return %c0_i32, %c0_i32_0, %c0_i32_1 : i32, i32, i32
  }
  func.func @transform_3(%arg0: i32) -> (i32, i32, i32) {
    %c0_i32 = arith.constant 0 : i32
    %c0_i32_0 = arith.constant 0 : i32
    %c0_i32_1 = arith.constant 0 : i32
    %c0_i32_2 = arith.constant 0 : i32
    return %c0_i32, %c0_i32_0, %c0_i32_1 : i32, i32, i32
  }
  func.func @transform_4(%arg0: i32) -> (i32, i32, i32) {
    %c0_i32 = arith.constant 0 : i32
    %c0_i32_0 = arith.constant 0 : i32
    %c0_i32_1 = arith.constant 0 : i32
    %c0_i32_2 = arith.constant 0 : i32
    return %c0_i32, %c0_i32_0, %c0_i32_1 : i32, i32, i32
  }
  func.func @transform_5(%arg0: i32) -> (i32, i32, i32) {
    %c0_i32 = arith.constant 0 : i32
    %c0_i32_0 = arith.constant 0 : i32
    %c0_i32_1 = arith.constant 0 : i32
    %c0_i32_2 = arith.constant 0 : i32
    return %c0_i32, %c0_i32_0, %c0_i32_1 : i32, i32, i32
  }
  func.func @transform_6(%arg0: i32) -> (i32, i32, i32) {
    %c0_i32 = arith.constant 0 : i32
    %c0_i32_0 = arith.constant 0 : i32
    %c0_i32_1 = arith.constant 0 : i32
    %c0_i32_2 = arith.constant 0 : i32
    return %c0_i32, %c0_i32_0, %c0_i32_1 : i32, i32, i32
  }
  func.func @transform_7(%arg0: i32) -> (i32, i32, i32) {
    %c0_i32 = arith.constant 0 : i32
    %c0_i32_0 = arith.constant 0 : i32
    %c0_i32_1 = arith.constant 0 : i32
    %c0_i32_2 = arith.constant 0 : i32
    return %c0_i32, %c0_i32_0, %c0_i32_1 : i32, i32, i32
  }
  func.func @transform_8(%arg0: i32) -> (i32, i32) {
    %c0_i32 = arith.constant 0 : i32
    %c0_i32_0 = arith.constant 0 : i32
    return %c0_i32, %arg0 : i32, i32
  }
}

</mosaic_0001>

<llo_original>
// kernel: _nf_forward_jit.1
$region0: #{_nf_forward_jit.1}
  #allocation0 [shape = 'u32[]', space=smem, size = 0x4, offset = 0x4, fixed_abs, tag = 'smem constant byte address 0x4 - core index']
  #allocation1 [shape = 'u32[144,128]{1,0:T(1,128)}', space=vmem, size = 0x12000, scoped, tag = 'internal scratch']
  %s0 = inlined_call_operand.vmem [shape: f32[128,16], index: 0, kind: input, shape index: {}]
  %s1 = inlined_call_operand.vmem [shape: f32[16,16], index: 1, kind: input, shape index: {}]
  %s2 = inlined_call_operand.vmem [shape: f32[4,64,8], index: 2, kind: input, shape index: {}]
  %s3 = inlined_call_operand.vmem [shape: f32[4,64,1], index: 3, kind: input, shape index: {}]
  %s4 = inlined_call_operand.vmem [shape: f32[4,64,64], index: 4, kind: input, shape index: {}]
  %s5 = inlined_call_operand.vmem [shape: f32[4,64,1], index: 5, kind: input, shape index: {}]
  %s6 = inlined_call_operand.vmem [shape: f32[4,16,64], index: 6, kind: input, shape index: {}]
  %s7 = inlined_call_operand.vmem [shape: f32[4,16,1], index: 7, kind: input, shape index: {}]
  %s8 = inlined_call_operand.vmem [shape: f32[72,128], index: 8, kind: output, shape index: {}]
  %s9 = sld [smem:[#allocation0]]
  $region42: #{_nf_forward_jit.1} parent=0
    _
  %s11 = ssub.s32 1, %s9
  %s12 = scalar_select 0, %s11, %s9
  // Predicated region
  $region2: #{_nf_forward_jit.1} parent=0 // pred_check
    _
  $region3: #{_nf_forward_jit.1} parent=0 // pred_check_branch
    %14 = sbr.rel (0) target = $region5
  $region4: #{_nf_forward_jit.1} parent=0 // pred_region
    _
  $region5: #{_nf_forward_jit.1} parent=0 // pred_fallthru
    _
  // Predicated region
  $region6: #{_nf_forward_jit.1} parent=0 // pred_check
    _
  $region7: #{_nf_forward_jit.1} parent=0 // pred_check_branch
    %16 = sbr.rel (0) target = $region9
  $region8: #{_nf_forward_jit.1} parent=0 // pred_region
    _
  $region9: #{_nf_forward_jit.1} parent=0 // pred_fallthru
    _
  // Predicated region
  $region10: #{_nf_forward_jit.1} parent=0 // pred_check
    _
  $region11: #{_nf_forward_jit.1} parent=0 // pred_check_branch
    %18 = sbr.rel (0) target = $region13
  $region12: #{_nf_forward_jit.1} parent=0 // pred_region
    _
  $region13: #{_nf_forward_jit.1} parent=0 // pred_fallthru
    _
  // Predicated region
  $region14: #{_nf_forward_jit.1} parent=0 // pred_check
    _
  $region15: #{_nf_forward_jit.1} parent=0 // pred_check_branch
    %20 = sbr.rel (0) target = $region17
  $region16: #{_nf_forward_jit.1} parent=0 // pred_region
    _
  $region17: #{_nf_forward_jit.1} parent=0 // pred_fallthru
    _
  // Predicated region
  $region18: #{_nf_forward_jit.1} parent=0 // pred_check
    _
  $region19: #{_nf_forward_jit.1} parent=0 // pred_check_branch
    %22 = sbr.rel (0) target = $region21
  $region20: #{_nf_forward_jit.1} parent=0 // pred_region
    _
  $region21: #{_nf_forward_jit.1} parent=0 // pred_fallthru
    _
  // Predicated region
  $region22: #{_nf_forward_jit.1} parent=0 // pred_check
    _
  $region23: #{_nf_forward_jit.1} parent=0 // pred_check_branch
    %24 = sbr.rel (0) target = $region25
  $region24: #{_nf_forward_jit.1} parent=0 // pred_region
    _
  $region25: #{_nf_forward_jit.1} parent=0 // pred_fallthru
    _
  // Predicated region
  $region26: #{_nf_forward_jit.1} parent=0 // pred_check
    _
  $region27: #{_nf_forward_jit.1} parent=0 // pred_check_branch
    %26 = sbr.rel (0) target = $region29
  $region28: #{_nf_forward_jit.1} parent=0 // pred_region
    _
  $region29: #{_nf_forward_jit.1} parent=0 // pred_fallthru
    _
  // Predicated region
  $region30: #{_nf_forward_jit.1} parent=0 // pred_check
    _
  $region31: #{_nf_forward_jit.1} parent=0 // pred_check_branch
    %28 = sbr.rel (0) target = $region33
  $region32: #{_nf_forward_jit.1} parent=0 // pred_region
    _
  $region33: #{_nf_forward_jit.1} parent=0 // pred_fallthru
    _
  %v29 = vld [vmem:[%s0] sm:$0xff]
  %v30 = vld [vmem:[%s0 + $0x8] sm:$0xff]
  %v31 = vld [vmem:[%s0 + $0x10] sm:$0xff]
  %v32 = vld [vmem:[%s0 + $0x18] sm:$0xff]
  %v33 = vld [vmem:[%s0 + $0x20] sm:$0xff]
  %v34 = vld [vmem:[%s0 + $0x28] sm:$0xff]
  %v35 = vld [vmem:[%s0 + $0x30] sm:$0xff]
  %v36 = vld [vmem:[%s0 + $0x38] sm:$0xff]
  %v37 = vld [vmem:[%s0 + $0x40] sm:$0xff]
  %v38 = vld [vmem:[%s0 + $0x48] sm:$0xff]
  %v39 = vld [vmem:[%s0 + $0x50] sm:$0xff]
  %v40 = vld [vmem:[%s0 + $0x58] sm:$0xff]
  %v41 = vld [vmem:[%s0 + $0x60] sm:$0xff]
  %v42 = vld [vmem:[%s0 + $0x68] sm:$0xff]
  %v43 = vld [vmem:[%s0 + $0x70] sm:$0xff]
  %v44 = vld [vmem:[%s0 + $0x78] sm:$0xff]
  %v45 = vld [vmem:[%s1] sm:$0xff]
  %vm46 = vcmask 130048
  %v48 = vsel %vm46, %v45, 0
  %v51 = vsel %vm46, %v29, 0
  %v54 = vsel %vm46, %v30, 0
  %v57 = vsel %vm46, %v31, 0
  %v60 = vsel %vm46, %v32, 0
  %v63 = vsel %vm46, %v33, 0
  %v66 = vsel %vm46, %v34, 0
  %v69 = vsel %vm46, %v35, 0
  %v72 = vsel %vm46, %v36, 0
  %v75 = vsel %vm46, %v37, 0
  %v78 = vsel %vm46, %v38, 0
  %v81 = vsel %vm46, %v39, 0
  %v84 = vsel %vm46, %v40, 0
  %v87 = vsel %vm46, %v41, 0
  %v90 = vsel %vm46, %v42, 0
  %v93 = vsel %vm46, %v43, 0
  %v96 = vsel %vm46, %v44, 0
  %98 = vmatprep.subr.mxu0 0.0
  %99 = vmatpush1.xpose.msra.mxu0 %v96
  %100 = vmatprep.subr.mxu0 0.0
  %101 = vmatpush1.xpose.msra.mxu0 %v93
  %102 = vmatprep.subr.mxu0 0.0
  %103 = vmatpush1.xpose.msra.mxu0 %v90
  %104 = vmatprep.subr.mxu0 0.0
  %105 = vmatpush1.xpose.msra.mxu0 %v87
  %106 = vmatprep.subr.mxu0 0.0
  %107 = vmatpush1.xpose.msra.mxu0 %v84
  %108 = vmatprep.subr.mxu0 0.0
  %109 = vmatpush1.xpose.msra.mxu0 %v81
  %110 = vmatprep.subr.mxu0 0.0
  %111 = vmatpush1.xpose.msra.mxu0 %v78
  %112 = vmatprep.subr.mxu0 0.0
  %113 = vmatpush1.xpose.msra.mxu0 %v75
  %114 = vmatprep.subr.mxu0 0.0
  %115 = vmatpush1.xpose.msra.mxu0 %v72
  %116 = vmatprep.subr.mxu0 0.0
  %117 = vmatpush1.xpose.msra.mxu0 %v69
  %118 = vmatprep.subr.mxu0 0.0
  %119 = vmatpush1.xpose.msra.mxu0 %v66
  %120 = vmatprep.subr.mxu0 0.0
  %121 = vmatpush1.xpose.msra.mxu0 %v63
  %122 = vmatprep.subr.mxu0 0.0
  %123 = vmatpush1.xpose.msra.mxu0 %v60
  %124 = vmatprep.subr.mxu0 0.0
  %125 = vmatpush1.xpose.msra.mxu0 %v57
  %126 = vmatprep.subr.mxu0 0.0
  %127 = vmatpush1.xpose.msra.mxu0 %v54
  %128 = vmatprep.subr.mxu0 0.0
  %129 = vmatpush1.xpose.msra.mxu0 %v51
  %130 = vmatprep.subr.mxu0 0.0
  %131 = vmatpush2.xpose.msra.mxu0 0.0
  %132 = vmatprep.subr.mxu0 0.0
  %133 = vmatpush2.xpose.msra.mxu0 0.0
  %134 = vmatprep.subr.mxu0 0.0
  %135 = vmatpush2.xpose.msra.mxu0 0.0
  %136 = vmatprep.subr.mxu0 0.0
  %137 = vmatpush2.xpose.msra.mxu0 0.0
  %138 = vmatprep.subr.mxu0 0.0
  %139 = vmatpush2.xpose.msra.mxu0 0.0
  %140 = vmatprep.subr.mxu0 0.0
  %141 = vmatpush2.xpose.msra.mxu0 0.0
  %142 = vmatprep.subr.mxu0 0.0
  %143 = vmatpush2.xpose.msra.mxu0 0.0
  %144 = vmatprep.subr.mxu0 0.0
  %145 = vmatpush2.xpose.msra.mxu0 0.0
  %146 = vmatprep.subr.mxu0 0.0
  %147 = vmatpush2.xpose.msra.mxu0 0.0
  %148 = vmatprep.subr.mxu0 0.0
  %149 = vmatpush2.xpose.msra.mxu0 0.0
  %150 = vmatprep.subr.mxu0 0.0
  %151 = vmatpush2.xpose.msra.mxu0 0.0
  %152 = vmatprep.subr.mxu0 0.0
  %153 = vmatpush2.xpose.msra.mxu0 0.0
  %154 = vmatprep.subr.mxu0 0.0
  %155 = vmatpush2.xpose.msra.mxu0 0.0
  %156 = vmatprep.subr.mxu0 0.0
  %157 = vmatpush2.xpose.msra.mxu0 0.0
  %158 = vmatprep.subr.mxu0 0.0
  %159 = vmatpush2.xpose.msra.mxu0 0.0
  %160 = vmatprep.subr.mxu0 0.0
  %161 = vmatpush2.xpose.msra.mxu0 0.0
  %162 = vmatprep.mubr.f32.mxu0 0.0
  %163 = vmatmul.mubr.f32.gmra.mxu0 %v48
  %v164 = vpop.f32.mrf.mxu0
  %v165 = vadd.f32 0.0, %v164
  %v166 = vpop.f32.mrf.mxu0
  %167 = vdwg.mxu0
  %v168 = vld [vmem:[%s1 + $0x8] sm:$0xff]
  %v170 = vsel %vm46, %v168, 0
  %172 = vmatprep.subr.mxu0 0.0
  %173 = vmatpush1.xpose.msra.mxu0 %v96
  %174 = vmatprep.subr.mxu0 0.0
  %175 = vmatpush1.xpose.msra.mxu0 %v93
  %176 = vmatprep.subr.mxu0 0.0
  %177 = vmatpush1.xpose.msra.mxu0 %v90
  %178 = vmatprep.subr.mxu0 0.0
  %179 = vmatpush1.xpose.msra.mxu0 %v87
  %180 = vmatprep.subr.mxu0 0.0
  %181 = vmatpush1.xpose.msra.mxu0 %v84
  %182 = vmatprep.subr.mxu0 0.0
  %183 = vmatpush1.xpose.msra.mxu0 %v81
  %184 = vmatprep.subr.mxu0 0.0
  %185 = vmatpush1.xpose.msra.mxu0 %v78
  %186 = vmatprep.subr.mxu0 0.0
  %187 = vmatpush1.xpose.msra.mxu0 %v75
  %188 = vmatprep.subr.mxu0 0.0
  %189 = vmatpush1.xpose.msra.mxu0 %v72
  %190 = vmatprep.subr.mxu0 0.0
  %191 = vmatpush1.xpose.msra.mxu0 %v69
  %192 = vmatprep.subr.mxu0 0.0
  %193 = vmatpush1.xpose.msra.mxu0 %v66
  %194 = vmatprep.subr.mxu0 0.0
  %195 = vmatpush1.xpose.msra.mxu0 %v63
  %196 = vmatprep.subr.mxu0 0.0
  %197 = vmatpush1.xpose.msra.mxu0 %v60
  %198 = vmatprep.subr.mxu0 0.0
  %199 = vmatpush1.xpose.msra.mxu0 %v57
  %200 = vmatprep.subr.mxu0 0.0
  %201 = vmatpush1.xpose.msra.mxu0 %v54
  %202 = vmatprep.subr.mxu0 0.0
  %203 = vmatpush1.xpose.msra.mxu0 %v51
  %204 = vmatprep.subr.mxu0 0.0
  %205 = vmatpush2.xpose.msra.mxu0 0.0
  %206 = vmatprep.subr.mxu0 0.0
  %207 = vmatpush2.xpose.msra.mxu0 0.0
  %208 = vmatprep.subr.mxu0 0.0
  %209 = vmatpush2.xpose.msra.mxu0 0.0
  %210 = vmatprep.subr.mxu0 0.0
  %211 = vmatpush2.xpose.msra.mxu0 0.0
  %212 = vmatprep.subr.mxu0 0.0
  %213 = vmatpush2.xpose.msra.mxu0 0.0
  %214 = vmatprep.subr.mxu0 0.0
  %215 = vmatpush2.xpose.msra.mxu0 0.0
  %216 = vmatprep.subr.mxu0 0.0
  %217 = vmatpush2.xpose.msra.mxu0 0.0
  %218 = vmatprep.subr.mxu0 0.0
  %219 = vmatpush2.xpose.msra.mxu0 0.0
  %220 = vmatprep.subr.mxu0 0.0
  %221 = vmatpush2.xpose.msra.mxu0 0.0
  %222 = vmatprep.subr.mxu0 0.0
  %223 = vmatpush2.xpose.msra.mxu0 0.0
  %224 = vmatprep.subr.mxu0 0.0
  %225 = vmatpush2.xpose.msra.mxu0 0.0
  %226 = vmatprep.subr.mxu0 0.0
  %227 = vmatpush2.xpose.msra.mxu0 0.0
  %228 = vmatprep.subr.mxu0 0.0
  %229 = vmatpush2.xpose.msra.mxu0 0.0
  %230 = vmatprep.subr.mxu0 0.0
  %231 = vmatpush2.xpose.msra.mxu0 0.0
  %232 = vmatprep.subr.mxu0 0.0
  %233 = vmatpush2.xpose.msra.mxu0 0.0
  %234 = vmatprep.subr.mxu0 0.0
  %235 = vmatpush2.xpose.msra.mxu0 0.0
  %236 = vmatprep.mubr.f32.mxu0 0.0
  %237 = vmatmul.mubr.f32.gmra.mxu0 %v170
  %v238 = vpop.f32.mrf.mxu0
  %v239 = vadd.f32 0.0, %v238
  %v240 = vpop.f32.mrf.mxu0
  %241 = vdwg.mxu0
  %v242 = vld [vmem:[%s2] sm:$0xff]
  %v243 = vld [vmem:[%s2 + $0x8] sm:$0xff]
  %v244 = vld [vmem:[%s2 + $0x10] sm:$0xff]
  %v245 = vld [vmem:[%s2 + $0x18] sm:$0xff]
  %v246 = vld [vmem:[%s2 + $0x20] sm:$0xff]
  %v247 = vld [vmem:[%s2 + $0x28] sm:$0xff]
  %v248 = vld [vmem:[%s2 + $0x30] sm:$0xff]
  %v249 = vld [vmem:[%s2 + $0x38] sm:$0xff]
  %v250 = vld [vmem:[%s3] sm:$0xff]
  %v251 = vld [vmem:[%s3 + $0x8] sm:$0xff]
  %v252 = vld [vmem:[%s3 + $0x10] sm:$0xff]
  %v253 = vld [vmem:[%s3 + $0x18] sm:$0xff]
  %v254 = vld [vmem:[%s3 + $0x20] sm:$0xff]
  %v255 = vld [vmem:[%s3 + $0x28] sm:$0xff]
  %v256 = vld [vmem:[%s3 + $0x30] sm:$0xff]
  %v257 = vld [vmem:[%s3 + $0x38] sm:$0xff]
  %259 = vset.pattern.permute.xlu0 0
  %260 = vperm.xlu0 %259, %v250
  %v261 = vpop.permute.xlu0 %260
  %264 = vset.pattern.permute.xlu0 0
  %265 = vperm.xlu0 %264, %v251
  %v266 = vpop.permute.xlu0 %265
  %269 = vset.pattern.permute.xlu0 0
  %270 = vperm.xlu0 %269, %v252
  %v271 = vpop.permute.xlu0 %270
  %274 = vset.pattern.permute.xlu0 0
  %275 = vperm.xlu0 %274, %v253
  %v276 = vpop.permute.xlu0 %275
  %279 = vset.pattern.permute.xlu0 0
  %280 = vperm.xlu0 %279, %v254
  %v281 = vpop.permute.xlu0 %280
  %284 = vset.pattern.permute.xlu0 0
  %285 = vperm.xlu0 %284, %v255
  %v286 = vpop.permute.xlu0 %285
  %289 = vset.pattern.permute.xlu0 0
  %290 = vperm.xlu0 %289, %v256
  %v291 = vpop.permute.xlu0 %290
  %294 = vset.pattern.permute.xlu0 0
  %295 = vperm.xlu0 %294, %v257
  %v296 = vpop.permute.xlu0 %295
  %vm298 = vcmask 64512
  %v300 = vsel %vm298, %v242, 0
  %v303 = vsel %vm298, %v243, 0
  %v306 = vsel %vm298, %v244, 0
  %v309 = vsel %vm298, %v245, 0
  %v312 = vsel %vm298, %v246, 0
  %v315 = vsel %vm298, %v247, 0
  %v318 = vsel %vm298, %v248, 0
  %v321 = vsel %vm298, %v249, 0
  %323 = vmatprep.subr.mxu0 0.0
  %324 = vmatpush1.msra.mxu0 0.0
  %325 = vmatprep.subr.mxu0 0.0
  %326 = vmatpush1.msra.mxu0 0.0
  %327 = vmatprep.subr.mxu0 0.0
  %328 = vmatpush1.msra.mxu0 0.0
  %329 = vmatprep.subr.mxu0 0.0
  %330 = vmatpush1.msra.mxu0 0.0
  %331 = vmatprep.subr.mxu0 0.0
  %332 = vmatpush1.msra.mxu0 0.0
  %333 = vmatprep.subr.mxu0 0.0
  %334 = vmatpush1.msra.mxu0 0.0
  %335 = vmatprep.subr.mxu0 0.0
  %336 = vmatpush1.msra.mxu0 0.0
  %337 = vmatprep.subr.mxu0 0.0
  %338 = vmatpush1.msra.mxu0 0.0
  %339 = vmatprep.subr.mxu0 0.0
  %340 = vmatpush1.msra.mxu0 0.0
  %341 = vmatprep.subr.mxu0 0.0
  %342 = vmatpush1.msra.mxu0 0.0
  %343 = vmatprep.subr.mxu0 0.0
  %344 = vmatpush1.msra.mxu0 0.0
  %345 = vmatprep.subr.mxu0 0.0
  %346 = vmatpush1.msra.mxu0 0.0
  %347 = vmatprep.subr.mxu0 0.0
  %348 = vmatpush1.msra.mxu0 0.0
  %349 = vmatprep.subr.mxu0 0.0
  %350 = vmatpush1.msra.mxu0 0.0
  %351 = vmatprep.subr.mxu0 0.0
  %352 = vmatpush1.msra.mxu0 0.0
  %353 = vmatprep.subr.mxu0 0.0
  %354 = vmatpush1.msra.mxu0 %v165
  %355 = vmatprep.subr.mxu0 0.0
  %356 = vmatpush2.msra.mxu0 0.0
  %357 = vmatprep.subr.mxu0 0.0
  %358 = vmatpush2.msra.mxu0 0.0
  %359 = vmatprep.subr.mxu0 0.0
  %360 = vmatpush2.msra.mxu0 0.0
  %361 = vmatprep.subr.mxu0 0.0
  %362 = vmatpush2.msra.mxu0 0.0
  %363 = vmatprep.subr.mxu0 0.0
  %364 = vmatpush2.msra.mxu0 0.0
  %365 = vmatprep.subr.mxu0 0.0
  %366 = vmatpush2.msra.mxu0 0.0
  %367 = vmatprep.subr.mxu0 0.0
  %368 = vmatpush2.msra.mxu0 0.0
  %369 = vmatprep.subr.mxu0 0.0
  %370 = vmatpush2.msra.mxu0 0.0
  %371 = vmatprep.subr.mxu0 0.0
  %372 = vmatpush2.msra.mxu0 0.0
  %373 = vmatprep.subr.mxu0 0.0
  %374 = vmatpush2.msra.mxu0 0.0
  %375 = vmatprep.subr.mxu0 0.0
  %376 = vmatpush2.msra.mxu0 0.0
  %377 = vmatprep.subr.mxu0 0.0
  %378 = vmatpush2.msra.mxu0 0.0
  %379 = vmatprep.subr.mxu0 0.0
  %380 = vmatpush2.msra.mxu0 0.0
  %381 = vmatprep.subr.mxu0 0.0
  %382 = vmatpush2.msra.mxu0 0.0
  %383 = vmatprep.subr.mxu0 0.0
  %384 = vmatpush2.msra.mxu0 0.0
  %385 = vmatprep.subr.mxu0 0.0
  %386 = vmatpush2.msra.mxu0 0.0
  %387 = vmatprep.mubr.f32.mxu0 0.0
  %388 = vmatmul.mubr.f32.gmra.mxu0 %v300
  %v389 = vpop.f32.mrf.mxu0
  %v390 = vadd.f32 %v261, %v389
  %v391 = vpop.f32.mrf.mxu0
  %392 = vmatprep.mubr.f32.mxu0 0.0
  %393 = vmatmul.mubr.f32.gmra.mxu0 %v303
  %v394 = vpop.f32.mrf.mxu0
  %v395 = vadd.f32 %v266, %v394
  %v396 = vpop.f32.mrf.mxu0
  %397 = vmatprep.mubr.f32.mxu0 0.0
  %398 = vmatmul.mubr.f32.gmra.mxu0 %v306
  %v399 = vpop.f32.mrf.mxu0
  %v400 = vadd.f32 %v271, %v399
  %v401 = vpop.f32.mrf.mxu0
  %402 = vmatprep.mubr.f32.mxu0 0.0
  %403 = vmatmul.mubr.f32.gmra.mxu0 %v309
  %v404 = vpop.f32.mrf.mxu0
  %v405 = vadd.f32 %v276, %v404
  %v406 = vpop.f32.mrf.mxu0
  %407 = vmatprep.mubr.f32.mxu0 0.0
  %408 = vmatmul.mubr.f32.gmra.mxu0 %v312
  %v409 = vpop.f32.mrf.mxu0
  %v410 = vadd.f32 %v281, %v409
  %v411 = vpop.f32.mrf.mxu0
  %412 = vmatprep.mubr.f32.mxu0 0.0
  %413 = vmatmul.mubr.f32.gmra.mxu0 %v315
  %v414 = vpop.f32.mrf.mxu0
  %v415 = vadd.f32 %v286, %v414
  %v416 = vpop.f32.mrf.mxu0
  %417 = vmatprep.mubr.f32.mxu0 0.0
  %418 = vmatmul.mubr.f32.gmra.mxu0 %v318
  %v419 = vpop.f32.mrf.mxu0
  %v420 = vadd.f32 %v291, %v419
  %v421 = vpop.f32.mrf.mxu0
  %422 = vmatprep.mubr.f32.mxu0 0.0
  %423 = vmatmul.mubr.f32.gmra.mxu0 %v321
  %v424 = vpop.f32.mrf.mxu0
  %v425 = vadd.f32 %v296, %v424
  %v426 = vpop.f32.mrf.mxu0
  %427 = vdwg.mxu0
  %v428 = vmul.f32 %v390, 0.01
  %v429 = vmul.f32 %v395, 0.01
  %v430 = vmul.f32 %v400, 0.01
  %v431 = vmul.f32 %v405, 0.01
  %v432 = vmul.f32 %v410, 0.01
  %v433 = vmul.f32 %v415, 0.01
  %v434 = vmul.f32 %v420, 0.01
  %v435 = vmul.f32 %v425, 0.01
  %v436 = vmax.f32 %v390, %v428
  %v437 = vmax.f32 %v395, %v429
  %v438 = vmax.f32 %v400, %v430
  %v439 = vmax.f32 %v405, %v431
  %v440 = vmax.f32 %v410, %v432
  %v441 = vmax.f32 %v415, %v433
  %v442 = vmax.f32 %v420, %v434
  %v443 = vmax.f32 %v425, %v435
  %v444 = vld [vmem:[%s4] sm:$0xff]
  %v445 = vld [vmem:[%s4 + $0x8] sm:$0xff]
  %v446 = vld [vmem:[%s4 + $0x10] sm:$0xff]
  %v447 = vld [vmem:[%s4 + $0x18] sm:$0xff]
  %v448 = vld [vmem:[%s4 + $0x20] sm:$0xff]
  %v449 = vld [vmem:[%s4 + $0x28] sm:$0xff]
  %v450 = vld [vmem:[%s4 + $0x30] sm:$0xff]
  %v451 = vld [vmem:[%s4 + $0x38] sm:$0xff]
  %v452 = vld [vmem:[%s5] sm:$0xff]
  %v453 = vld [vmem:[%s5 + $0x8] sm:$0xff]
  %v454 = vld [vmem:[%s5 + $0x10] sm:$0xff]
  %v455 = vld [vmem:[%s5 + $0x18] sm:$0xff]
  %v456 = vld [vmem:[%s5 + $0x20] sm:$0xff]
  %v457 = vld [vmem:[%s5 + $0x28] sm:$0xff]
  %v458 = vld [vmem:[%s5 + $0x30] sm:$0xff]
  %v459 = vld [vmem:[%s5 + $0x38] sm:$0xff]
  %461 = vset.pattern.permute.xlu0 0
  %462 = vperm.xlu0 %461, %v452
  %v463 = vpop.permute.xlu0 %462
  %466 = vset.pattern.permute.xlu0 0
  %467 = vperm.xlu0 %466, %v453
  %v468 = vpop.permute.xlu0 %467
  %471 = vset.pattern.permute.xlu0 0
  %472 = vperm.xlu0 %471, %v454
  %v473 = vpop.permute.xlu0 %472
  %476 = vset.pattern.permute.xlu0 0
  %477 = vperm.xlu0 %476, %v455
  %v478 = vpop.permute.xlu0 %477
  %481 = vset.pattern.permute.xlu0 0
  %482 = vperm.xlu0 %481, %v456
  %v483 = vpop.permute.xlu0 %482
  %486 = vset.pattern.permute.xlu0 0
  %487 = vperm.xlu0 %486, %v457
  %v488 = vpop.permute.xlu0 %487
  %491 = vset.pattern.permute.xlu0 0
  %492 = vperm.xlu0 %491, %v458
  %v493 = vpop.permute.xlu0 %492
  %496 = vset.pattern.permute.xlu0 0
  %497 = vperm.xlu0 %496, %v459
  %v498 = vpop.permute.xlu0 %497
  %vm500 = vcmask 523264
  %v502 = vsel %vm500, %v444, 0
  %v505 = vsel %vm500, %v445, 0
  %v508 = vsel %vm500, %v446, 0
  %v511 = vsel %vm500, %v447, 0
  %v514 = vsel %vm500, %v448, 0
  %v517 = vsel %vm500, %v449, 0
  %v520 = vsel %vm500, %v450, 0
  %v523 = vsel %vm500, %v451, 0
  %525 = vmatprep.subr.mxu0 0.0
  %526 = vmatpush1.msra.mxu0 0.0
  %527 = vmatprep.subr.mxu0 0.0
  %528 = vmatpush1.msra.mxu0 0.0
  %529 = vmatprep.subr.mxu0 0.0
  %530 = vmatpush1.msra.mxu0 0.0
  %531 = vmatprep.subr.mxu0 0.0
  %532 = vmatpush1.msra.mxu0 0.0
  %533 = vmatprep.subr.mxu0 0.0
  %534 = vmatpush1.msra.mxu0 0.0
  %535 = vmatprep.subr.mxu0 0.0
  %536 = vmatpush1.msra.mxu0 0.0
  %537 = vmatprep.subr.mxu0 0.0
  %538 = vmatpush1.msra.mxu0 0.0
  %539 = vmatprep.subr.mxu0 0.0
  %540 = vmatpush1.msra.mxu0 0.0
  %541 = vmatprep.subr.mxu0 0.0
  %542 = vmatpush1.msra.mxu0 %v443
  %543 = vmatprep.subr.mxu0 0.0
  %544 = vmatpush1.msra.mxu0 %v442
  %545 = vmatprep.subr.mxu0 0.0
  %546 = vmatpush1.msra.mxu0 %v441
  %547 = vmatprep.subr.mxu0 0.0
  %548 = vmatpush1.msra.mxu0 %v440
  %549 = vmatprep.subr.mxu0 0.0
  %550 = vmatpush1.msra.mxu0 %v439
  %551 = vmatprep.subr.mxu0 0.0
  %552 = vmatpush1.msra.mxu0 %v438
  %553 = vmatprep.subr.mxu0 0.0
  %554 = vmatpush1.msra.mxu0 %v437
  %555 = vmatprep.subr.mxu0 0.0
  %556 = vmatpush1.msra.mxu0 %v436
  %557 = vmatprep.subr.mxu0 0.0
  %558 = vmatpush2.msra.mxu0 0.0
  %559 = vmatprep.subr.mxu0 0.0
  %560 = vmatpush2.msra.mxu0 0.0
  %561 = vmatprep.subr.mxu0 0.0
  %562 = vmatpush2.msra.mxu0 0.0
  %563 = vmatprep.subr.mxu0 0.0
  %564 = vmatpush2.msra.mxu0 0.0
  %565 = vmatprep.subr.mxu0 0.0
  %566 = vmatpush2.msra.mxu0 0.0
  %567 = vmatprep.subr.mxu0 0.0
  %568 = vmatpush2.msra.mxu0 0.0
  %569 = vmatprep.subr.mxu0 0.0
  %570 = vmatpush2.msra.mxu0 0.0
  %571 = vmatprep.subr.mxu0 0.0
  %572 = vmatpush2.msra.mxu0 0.0
  %573 = vmatprep.subr.mxu0 0.0
  %574 = vmatpush2.msra.mxu0 0.0
  %575 = vmatprep.subr.mxu0 0.0
  %576 = vmatpush2.msra.mxu0 0.0
  %577 = vmatprep.subr.mxu0 0.0
  %578 = vmatpush2.msra.mxu0 0.0
  %579 = vmatprep.subr.mxu0 0.0
  %580 = vmatpush2.msra.mxu0 0.0
  %581 = vmatprep.subr.mxu0 0.0
  %582 = vmatpush2.msra.mxu0 0.0
  %583 = vmatprep.subr.mxu0 0.0
  %584 = vmatpush2.msra.mxu0 0.0
  %585 = vmatprep.subr.mxu0 0.0
  %586 = vmatpush2.msra.mxu0 0.0
  %587 = vmatprep.subr.mxu0 0.0
  %588 = vmatpush2.msra.mxu0 0.0
  %589 = vmatprep.mubr.f32.mxu0 0.0
  %590 = vmatmul.mubr.f32.gmra.mxu0 %v502
  %v591 = vpop.f32.mrf.mxu0
  %v592 = vadd.f32 %v463, %v591
  %v593 = vpop.f32.mrf.mxu0
  %594 = vmatprep.mubr.f32.mxu0 0.0
  %595 = vmatmul.mubr.f32.gmra.mxu0 %v505
  %v596 = vpop.f32.mrf.mxu0
  %v597 = vadd.f32 %v468, %v596
  %v598 = vpop.f32.mrf.mxu0
  %599 = vmatprep.mubr.f32.mxu0 0.0
  %600 = vmatmul.mubr.f32.gmra.mxu0 %v508
  %v601 = vpop.f32.mrf.mxu0
  %v602 = vadd.f32 %v473, %v601
  %v603 = vpop.f32.mrf.mxu0
  %604 = vmatprep.mubr.f32.mxu0 0.0
  %605 = vmatmul.mubr.f32.gmra.mxu0 %v511
  %v606 = vpop.f32.mrf.mxu0
  %v607 = vadd.f32 %v478, %v606
  %v608 = vpop.f32.mrf.mxu0
  %609 = vmatprep.mubr.f32.mxu0 0.0
  %610 = vmatmul.mubr.f32.gmra.mxu0 %v514
  %v611 = vpop.f32.mrf.mxu0
  %v612 = vadd.f32 %v483, %v611
  %v613 = vpop.f32.mrf.mxu0
  %614 = vmatprep.mubr.f32.mxu0 0.0
  %615 = vmatmul.mubr.f32.gmra.mxu0 %v517
  %v616 = vpop.f32.mrf.mxu0
  %v617 = vadd.f32 %v488, %v616
  %v618 = vpop.f32.mrf.mxu0
  %619 = vmatprep.mubr.f32.mxu0 0.0
  %620 = vmatmul.mubr.f32.gmra.mxu0 %v520
  %v621 = vpop.f32.mrf.mxu0
  %v622 = vadd.f32 %v493, %v621
  %v623 = vpop.f32.mrf.mxu0
  %624 = vmatprep.mubr.f32.mxu0 0.0
  %625 = vmatmul.mubr.f32.gmra.mxu0 %v523
  %v626 = vpop.f32.mrf.mxu0
  %v627 = vadd.f32 %v498, %v626
  %v628 = vpop.f32.mrf.mxu0
  %629 = vdwg.mxu0
  %v630 = vmul.f32 %v592, 0.01
  %v631 = vmul.f32 %v597, 0.01
  %v632 = vmul.f32 %v602, 0.01
  %v633 = vmul.f32 %v607, 0.01
  %v634 = vmul.f32 %v612, 0.01
  %v635 = vmul.f32 %v617, 0.01
  %v636 = vmul.f32 %v622, 0.01
  %v637 = vmul.f32 %v627, 0.01
  %v638 = vmax.f32 %v592, %v630
  %v639 = vmax.f32 %v597, %v631
  %v640 = vmax.f32 %v602, %v632
  %v641 = vmax.f32 %v607, %v633
  %v642 = vmax.f32 %v612, %v634
  %v643 = vmax.f32 %v617, %v635
  %v644 = vmax.f32 %v622, %v636
  %v645 = vmax.f32 %v627, %v637
  %v646 = vld [vmem:[%s6] sm:$0xff]
  %v647 = vld [vmem:[%s6 + $0x8] sm:$0xff]
  %v648 = vld [vmem:[%s7] sm:$0xff]
  %v649 = vld [vmem:[%s7 + $0x8] sm:$0xff]
  %651 = vset.pattern.permute.xlu0 0
  %652 = vperm.xlu0 %651, %v648
  %v653 = vpop.permute.xlu0 %652
  %656 = vset.pattern.permute.xlu0 0
  %657 = vperm.xlu0 %656, %v649
  %v658 = vpop.permute.xlu0 %657
  %v661 = vsel %vm500, %v646, 0
  %v664 = vsel %vm500, %v647, 0
  %666 = vmatprep.subr.mxu0 0.0
  %667 = vmatpush1.msra.mxu0 0.0
  %668 = vmatprep.subr.mxu0 0.0
  %669 = vmatpush1.msra.mxu0 0.0
  %670 = vmatprep.subr.mxu0 0.0
  %671 = vmatpush1.msra.mxu0 0.0
  %672 = vmatprep.subr.mxu0 0.0
  %673 = vmatpush1.msra.mxu0 0.0
  %674 = vmatprep.subr.mxu0 0.0
  %675 = vmatpush1.msra.mxu0 0.0
  %676 = vmatprep.subr.mxu0 0.0
  %677 = vmatpush1.msra.mxu0 0.0
  %678 = vmatprep.subr.mxu0 0.0
  %679 = vmatpush1.msra.mxu0 0.0
  %680 = vmatprep.subr.mxu0 0.0
  %681 = vmatpush1.msra.mxu0 0.0
  %682 = vmatprep.subr.mxu0 0.0
  %683 = vmatpush1.msra.mxu0 %v645
  %684 = vmatprep.subr.mxu0 0.0
  %685 = vmatpush1.msra.mxu0 %v644
  %686 = vmatprep.subr.mxu0 0.0
  %687 = vmatpush1.msra.mxu0 %v643
  %688 = vmatprep.subr.mxu0 0.0
  %689 = vmatpush1.msra.mxu0 %v642
  %690 = vmatprep.subr.mxu0 0.0
  %691 = vmatpush1.msra.mxu0 %v641
  %692 = vmatprep.subr.mxu0 0.0
  %693 = vmatpush1.msra.mxu0 %v640
  %694 = vmatprep.subr.mxu0 0.0
  %695 = vmatpush1.msra.mxu0 %v639
  %696 = vmatprep.subr.mxu0 0.0
  %697 = vmatpush1.msra.mxu0 %v638
  %698 = vmatprep.subr.mxu0 0.0
  %699 = vmatpush2.msra.mxu0 0.0
  %700 = vmatprep.subr.mxu0 0.0
  %701 = vmatpush2.msra.mxu0 0.0
  %702 = vmatprep.subr.mxu0 0.0
  %703 = vmatpush2.msra.mxu0 0.0
  %704 = vmatprep.subr.mxu0 0.0
  %705 = vmatpush2.msra.mxu0 0.0
  %706 = vmatprep.subr.mxu0 0.0
  %707 = vmatpush2.msra.mxu0 0.0
  %708 = vmatprep.subr.mxu0 0.0
  %709 = vmatpush2.msra.mxu0 0.0
  %710 = vmatprep.subr.mxu0 0.0
  %711 = vmatpush2.msra.mxu0 0.0
  %712 = vmatprep.subr.mxu0 0.0
  %713 = vmatpush2.msra.mxu0 0.0
  %714 = vmatprep.subr.mxu0 0.0
  %715 = vmatpush2.msra.mxu0 0.0
  %716 = vmatprep.subr.mxu0 0.0
  %717 = vmatpush2.msra.mxu0 0.0
  %718 = vmatprep.subr.mxu0 0.0
  %719 = vmatpush2.msra.mxu0 0.0
  %720 = vmatprep.subr.mxu0 0.0
  %721 = vmatpush2.msra.mxu0 0.0
  %722 = vmatprep.subr.mxu0 0.0
  %723 = vmatpush2.msra.mxu0 0.0
  %724 = vmatprep.subr.mxu0 0.0
  %725 = vmatpush2.msra.mxu0 0.0
  %726 = vmatprep.subr.mxu0 0.0
  %727 = vmatpush2.msra.mxu0 0.0
  %728 = vmatprep.subr.mxu0 0.0
  %729 = vmatpush2.msra.mxu0 0.0
  %730 = vmatprep.mubr.f32.mxu0 0.0
  %731 = vmatmul.mubr.f32.gmra.mxu0 %v661
  %v732 = vpop.f32.mrf.mxu0
  %v733 = vadd.f32 %v653, %v732
  %v734 = vpop.f32.mrf.mxu0
  %735 = vmatprep.mubr.f32.mxu0 0.0
  %736 = vmatmul.mubr.f32.gmra.mxu0 %v664
  %v737 = vpop.f32.mrf.mxu0
  %v738 = vadd.f32 %v658, %v737
  %v739 = vpop.f32.mrf.mxu0
  %740 = vdwg.mxu0
  %v741 = vmul.f32 %v733, 1.442695
  %v742 = vpow.pop %v741
  %v743 = vmul.f32 %v742, %v239
  %v744 = vadd.f32 %v743, %v738
  %v745 = vrot.slane %v733, 4
  %v746 = vadd.f32 %v733, %v745
  %v747 = vrot.slane %v746, 2
  %v748 = vadd.f32 %v746, %v747
  %v749 = vrot.slane %v748, 1
  %v750 = vadd.f32 %v748, %v749
  %v751 = vadd.f32 %v750, 0.0
  %752 = vst [vmem:[%s8] sm:$0xff] %v165
  %753 = vst [vmem:[%s8 + $0x8] sm:$0xff] %v744
  %s754 = scalar_lea.vmem %s2, 64
  %v755 = vld [vmem:[%s754] sm:$0xff]
  %v756 = vld [vmem:[%s754 + $0x8] sm:$0xff]
  %v757 = vld [vmem:[%s754 + $0x10] sm:$0xff]
  %v758 = vld [vmem:[%s754 + $0x18] sm:$0xff]
  %v759 = vld [vmem:[%s754 + $0x20] sm:$0xff]
  %v760 = vld [vmem:[%s754 + $0x28] sm:$0xff]
  %v761 = vld [vmem:[%s754 + $0x30] sm:$0xff]
  %v762 = vld [vmem:[%s754 + $0x38] sm:$0xff]
  %s763 = scalar_lea.vmem %s3, 64
  %v764 = vld [vmem:[%s763] sm:$0xff]
  %v765 = vld [vmem:[%s763 + $0x8] sm:$0xff]
  %v766 = vld [vmem:[%s763 + $0x10] sm:$0xff]
  %v767 = vld [vmem:[%s763 + $0x18] sm:$0xff]
  %v768 = vld [vmem:[%s763 + $0x20] sm:$0xff]
  %v769 = vld [vmem:[%s763 + $0x28] sm:$0xff]
  %v770 = vld [vmem:[%s763 + $0x30] sm:$0xff]
  %v771 = vld [vmem:[%s763 + $0x38] sm:$0xff]
  %773 = vset.pattern.permute.xlu0 0
  %774 = vperm.xlu0 %773, %v764
  %v775 = vpop.permute.xlu0 %774
  %778 = vset.pattern.permute.xlu0 0
  %779 = vperm.xlu0 %778, %v765
  %v780 = vpop.permute.xlu0 %779
  %783 = vset.pattern.permute.xlu0 0
  %784 = vperm.xlu0 %783, %v766
  %v785 = vpop.permute.xlu0 %784
  %788 = vset.pattern.permute.xlu0 0
  %789 = vperm.xlu0 %788, %v767
  %v790 = vpop.permute.xlu0 %789
  %793 = vset.pattern.permute.xlu0 0
  %794 = vperm.xlu0 %793, %v768
  %v795 = vpop.permute.xlu0 %794
  %798 = vset.pattern.permute.xlu0 0
  %799 = vperm.xlu0 %798, %v769
  %v800 = vpop.permute.xlu0 %799
  %803 = vset.pattern.permute.xlu0 0
  %804 = vperm.xlu0 %803, %v770
  %v805 = vpop.permute.xlu0 %804
  %808 = vset.pattern.permute.xlu0 0
  %809 = vperm.xlu0 %808, %v771
  %v810 = vpop.permute.xlu0 %809
  %v813 = vsel %vm298, %v755, 0
  %v816 = vsel %vm298, %v756, 0
  %v819 = vsel %vm298, %v757, 0
  %v822 = vsel %vm298, %v758, 0
  %v825 = vsel %vm298, %v759, 0
  %v828 = vsel %vm298, %v760, 0
  %v831 = vsel %vm298, %v761, 0
  %v834 = vsel %vm298, %v762, 0
  %836 = vmatprep.subr.mxu0 0.0
  %837 = vmatpush1.msra.mxu0 0.0
  %838 = vmatprep.subr.mxu0 0.0
  %839 = vmatpush1.msra.mxu0 0.0
  %840 = vmatprep.subr.mxu0 0.0
  %841 = vmatpush1.msra.mxu0 0.0
  %842 = vmatprep.subr.mxu0 0.0
  %843 = vmatpush1.msra.mxu0 0.0
  %844 = vmatprep.subr.mxu0 0.0
  %845 = vmatpush1.msra.mxu0 0.0
  %846 = vmatprep.subr.mxu0 0.0
  %847 = vmatpush1.msra.mxu0 0.0
  %848 = vmatprep.subr.mxu0 0.0
  %849 = vmatpush1.msra.mxu0 0.0
  %850 = vmatprep.subr.mxu0 0.0
  %851 = vmatpush1.msra.mxu0 0.0
  %852 = vmatprep.subr.mxu0 0.0
  %853 = vmatpush1.msra.mxu0 0.0
  %854 = vmatprep.subr.mxu0 0.0
  %855 = vmatpush1.msra.mxu0 0.0
  %856 = vmatprep.subr.mxu0 0.0
  %857 = vmatpush1.msra.mxu0 0.0
  %858 = vmatprep.subr.mxu0 0.0
  %859 = vmatpush1.msra.mxu0 0.0
  %860 = vmatprep.subr.mxu0 0.0
  %861 = vmatpush1.msra.mxu0 0.0
  %862 = vmatprep.subr.mxu0 0.0
  %863 = vmatpush1.msra.mxu0 0.0
  %864 = vmatprep.subr.mxu0 0.0
  %865 = vmatpush1.msra.mxu0 0.0
  %866 = vmatprep.subr.mxu0 0.0
  %867 = vmatpush1.msra.mxu0 %v744
  %868 = vmatprep.subr.mxu0 0.0
  %869 = vmatpush2.msra.mxu0 0.0
  %870 = vmatprep.subr.mxu0 0.0
  %871 = vmatpush2.msra.mxu0 0.0
  %872 = vmatprep.subr.mxu0 0.0
  %873 = vmatpush2.msra.mxu0 0.0
  %874 = vmatprep.subr.mxu0 0.0
  %875 = vmatpush2.msra.mxu0 0.0
  %876 = vmatprep.subr.mxu0 0.0
  %877 = vmatpush2.msra.mxu0 0.0
  %878 = vmatprep.subr.mxu0 0.0
  %879 = vmatpush2.msra.mxu0 0.0
  %880 = vmatprep.subr.mxu0 0.0
  %881 = vmatpush2.msra.mxu0 0.0
  %882 = vmatprep.subr.mxu0 0.0
  %883 = vmatpush2.msra.mxu0 0.0
  %884 = vmatprep.subr.mxu0 0.0
  %885 = vmatpush2.msra.mxu0 0.0
  %886 = vmatprep.subr.mxu0 0.0
  %887 = vmatpush2.msra.mxu0 0.0
  %888 = vmatprep.subr.mxu0 0.0
  %889 = vmatpush2.msra.mxu0 0.0
  %890 = vmatprep.subr.mxu0 0.0
  %891 = vmatpush2.msra.mxu0 0.0
  %892 = vmatprep.subr.mxu0 0.0
  %893 = vmatpush2.msra.mxu0 0.0
  %894 = vmatprep.subr.mxu0 0.0
  %895 = vmatpush2.msra.mxu0 0.0
  %896 = vmatprep.subr.mxu0 0.0
  %897 = vmatpush2.msra.mxu0 0.0
  %898 = vmatprep.subr.mxu0 0.0
  %899 = vmatpush2.msra.mxu0 0.0
  %900 = vmatprep.mubr.f32.mxu0 0.0
  %901 = vmatmul.mubr.f32.gmra.mxu0 %v813
  %v902 = vpop.f32.mrf.mxu0
  %v903 = vadd.f32 %v775, %v902
  %v904 = vpop.f32.mrf.mxu0
  %905 = vmatprep.mubr.f32.mxu0 0.0
  %906 = vmatmul.mubr.f32.gmra.mxu0 %v816
  %v907 = vpop.f32.mrf.mxu0
  %v908 = vadd.f32 %v780, %v907
  %v909 = vpop.f32.mrf.mxu0
  %910 = vmatprep.mubr.f32.mxu0 0.0
  %911 = vmatmul.mubr.f32.gmra.mxu0 %v819
  %v912 = vpop.f32.mrf.mxu0
  %v913 = vadd.f32 %v785, %v912
  %v914 = vpop.f32.mrf.mxu0
  %915 = vmatprep.mubr.f32.mxu0 0.0
  %916 = vmatmul.mubr.f32.gmra.mxu0 %v822
  %v917 = vpop.f32.mrf.mxu0
  %v918 = vadd.f32 %v790, %v917
  %v919 = vpop.f32.mrf.mxu0
  %920 = vmatprep.mubr.f32.mxu0 0.0
  %921 = vmatmul.mubr.f32.gmra.mxu0 %v825
  %v922 = vpop.f32.mrf.mxu0
  %v923 = vadd.f32 %v795, %v922
  %v924 = vpop.f32.mrf.mxu0
  %925 = vmatprep.mubr.f32.mxu0 0.0
  %926 = vmatmul.mubr.f32.gmra.mxu0 %v828
  %v927 = vpop.f32.mrf.mxu0
  %v928 = vadd.f32 %v800, %v927
  %v929 = vpop.f32.mrf.mxu0
  %930 = vmatprep.mubr.f32.mxu0 0.0
  %931 = vmatmul.mubr.f32.gmra.mxu0 %v831
  %v932 = vpop.f32.mrf.mxu0
  %v933 = vadd.f32 %v805, %v932
  %v934 = vpop.f32.mrf.mxu0
  %935 = vmatprep.mubr.f32.mxu0 0.0
  %936 = vmatmul.mubr.f32.gmra.mxu0 %v834
  %v937 = vpop.f32.mrf.mxu0
  %v938 = vadd.f32 %v810, %v937
  %v939 = vpop.f32.mrf.mxu0
  %940 = vdwg.mxu0
  %v941 = vmul.f32 %v903, 0.01
  %v942 = vmul.f32 %v908, 0.01
  %v943 = vmul.f32 %v913, 0.01
  %v944 = vmul.f32 %v918, 0.01
  %v945 = vmul.f32 %v923, 0.01
  %v946 = vmul.f32 %v928, 0.01
  %v947 = vmul.f32 %v933, 0.01
  %v948 = vmul.f32 %v938, 0.01
  %v949 = vmax.f32 %v903, %v941
  %v950 = vmax.f32 %v908, %v942
  %v951 = vmax.f32 %v913, %v943
  %v952 = vmax.f32 %v918, %v944
  %v953 = vmax.f32 %v923, %v945
  %v954 = vmax.f32 %v928, %v946
  %v955 = vmax.f32 %v933, %v947
  %v956 = vmax.f32 %v938, %v948
  %s957 = scalar_lea.vmem %s4, 64
  %v958 = vld [vmem:[%s957] sm:$0xff]
  %v959 = vld [vmem:[%s957 + $0x8] sm:$0xff]
  %v960 = vld [vmem:[%s957 + $0x10] sm:$0xff]
  %v961 = vld [vmem:[%s957 + $0x18] sm:$0xff]
  %v962 = vld [vmem:[%s957 + $0x20] sm:$0xff]
  %v963 = vld [vmem:[%s957 + $0x28] sm:$0xff]
  %v964 = vld [vmem:[%s957 + $0x30] sm:$0xff]
  %v965 = vld [vmem:[%s957 + $0x38] sm:$0xff]
  %s966 = scalar_lea.vmem %s5, 64
  %v967 = vld [vmem:[%s966] sm:$0xff]
  %v968 = vld [vmem:[%s966 + $0x8] sm:$0xff]
  %v969 = vld [vmem:[%s966 + $0x10] sm:$0xff]
  %v970 = vld [vmem:[%s966 + $0x18] sm:$0xff]
  %v971 = vld [vmem:[%s966 + $0x20] sm:$0xff]
  %v972 = vld [vmem:[%s966 + $0x28] sm:$0xff]
  %v973 = vld [vmem:[%s966 + $0x30] sm:$0xff]
  %v974 = vld [vmem:[%s966 + $0x38] sm:$0xff]
  %976 = vset.pattern.permute.xlu0 0
  %977 = vperm.xlu0 %976, %v967
  %v978 = vpop.permute.xlu0 %977
  %981 = vset.pattern.permute.xlu0 0
  %982 = vperm.xlu0 %981, %v968
  %v983 = vpop.permute.xlu0 %982
  %986 = vset.pattern.permute.xlu0 0
  %987 = vperm.xlu0 %986, %v969
  %v988 = vpop.permute.xlu0 %987
  %991 = vset.pattern.permute.xlu0 0
  %992 = vperm.xlu0 %991, %v970
  %v993 = vpop.permute.xlu0 %992
  %996 = vset.pattern.permute.xlu0 0
  %997 = vperm.xlu0 %996, %v971
  %v998 = vpop.permute.xlu0 %997
  %1001 = vset.pattern.permute.xlu0 0
  %1002 = vperm.xlu0 %1001, %v972
  %v1003 = vpop.permute.xlu0 %1002
  %1006 = vset.pattern.permute.xlu0 0
  %1007 = vperm.xlu0 %1006, %v973
  %v1008 = vpop.permute.xlu0 %1007
  %1011 = vset.pattern.permute.xlu0 0
  %1012 = vperm.xlu0 %1011, %v974
  %v1013 = vpop.permute.xlu0 %1012
  %v1016 = vsel %vm500, %v958, 0
  %v1019 = vsel %vm500, %v959, 0
  %v1022 = vsel %vm500, %v960, 0
  %v1025 = vsel %vm500, %v961, 0
  %v1028 = vsel %vm500, %v962, 0
  %v1031 = vsel %vm500, %v963, 0
  %v1034 = vsel %vm500, %v964, 0
  %v1037 = vsel %vm500, %v965, 0
  %1039 = vmatprep.subr.mxu0 0.0
  %1040 = vmatpush1.msra.mxu0 0.0
  %1041 = vmatprep.subr.mxu0 0.0
  %1042 = vmatpush1.msra.mxu0 0.0
  %1043 = vmatprep.subr.mxu0 0.0
  %1044 = vmatpush1.msra.mxu0 0.0
  %1045 = vmatprep.subr.mxu0 0.0
  %1046 = vmatpush1.msra.mxu0 0.0
  %1047 = vmatprep.subr.mxu0 0.0
  %1048 = vmatpush1.msra.mxu0 0.0
  %1049 = vmatprep.subr.mxu0 0.0
  %1050 = vmatpush1.msra.mxu0 0.0
  %1051 = vmatprep.subr.mxu0 0.0
  %1052 = vmatpush1.msra.mxu0 0.0
  %1053 = vmatprep.subr.mxu0 0.0
  %1054 = vmatpush1.msra.mxu0 0.0
  %1055 = vmatprep.subr.mxu0 0.0
  %1056 = vmatpush1.msra.mxu0 %v956
  %1057 = vmatprep.subr.mxu0 0.0
  %1058 = vmatpush1.msra.mxu0 %v955
  %1059 = vmatprep.subr.mxu0 0.0
  %1060 = vmatpush1.msra.mxu0 %v954
  %1061 = vmatprep.subr.mxu0 0.0
  %1062 = vmatpush1.msra.mxu0 %v953
  %1063 = vmatprep.subr.mxu0 0.0
  %1064 = vmatpush1.msra.mxu0 %v952
  %1065 = vmatprep.subr.mxu0 0.0
  %1066 = vmatpush1.msra.mxu0 %v951
  %1067 = vmatprep.subr.mxu0 0.0
  %1068 = vmatpush1.msra.mxu0 %v950
  %1069 = vmatprep.subr.mxu0 0.0
  %1070 = vmatpush1.msra.mxu0 %v949
  %1071 = vmatprep.subr.mxu0 0.0
  %1072 = vmatpush2.msra.mxu0 0.0
  %1073 = vmatprep.subr.mxu0 0.0
  %1074 = vmatpush2.msra.mxu0 0.0
  %1075 = vmatprep.subr.mxu0 0.0
  %1076 = vmatpush2.msra.mxu0 0.0
  %1077 = vmatprep.subr.mxu0 0.0
  %1078 = vmatpush2.msra.mxu0 0.0
  %1079 = vmatprep.subr.mxu0 0.0
  %1080 = vmatpush2.msra.mxu0 0.0
  %1081 = vmatprep.subr.mxu0 0.0
  %1082 = vmatpush2.msra.mxu0 0.0
  %1083 = vmatprep.subr.mxu0 0.0
  %1084 = vmatpush2.msra.mxu0 0.0
  %1085 = vmatprep.subr.mxu0 0.0
  %1086 = vmatpush2.msra.mxu0 0.0
  %1087 = vmatprep.subr.mxu0 0.0
  %1088 = vmatpush2.msra.mxu0 0.0
  %1089 = vmatprep.subr.mxu0 0.0
  %1090 = vmatpush2.msra.mxu0 0.0
  %1091 = vmatprep.subr.mxu0 0.0
  %1092 = vmatpush2.msra.mxu0 0.0
  %1093 = vmatprep.subr.mxu0 0.0
  %1094 = vmatpush2.msra.mxu0 0.0
  %1095 = vmatprep.subr.mxu0 0.0
  %1096 = vmatpush2.msra.mxu0 0.0
  %1097 = vmatprep.subr.mxu0 0.0
  %1098 = vmatpush2.msra.mxu0 0.0
  %1099 = vmatprep.subr.mxu0 0.0
  %1100 = vmatpush2.msra.mxu0 0.0
  %1101 = vmatprep.subr.mxu0 0.0
  %1102 = vmatpush2.msra.mxu0 0.0
  %1103 = vmatprep.mubr.f32.mxu0 0.0
  %1104 = vmatmul.mubr.f32.gmra.mxu0 %v1016
  %v1105 = vpop.f32.mrf.mxu0
  %v1106 = vadd.f32 %v978, %v1105
  %v1107 = vpop.f32.mrf.mxu0
  %1108 = vmatprep.mubr.f32.mxu0 0.0
  %1109 = vmatmul.mubr.f32.gmra.mxu0 %v1019
  %v1110 = vpop.f32.mrf.mxu0
  %v1111 = vadd.f32 %v983, %v1110
  %v1112 = vpop.f32.mrf.mxu0
  %1113 = vmatprep.mubr.f32.mxu0 0.0
  %1114 = vmatmul.mubr.f32.gmra.mxu0 %v1022
  %v1115 = vpop.f32.mrf.mxu0
  %v1116 = vadd.f32 %v988, %v1115
  %v1117 = vpop.f32.mrf.mxu0
  %1118 = vmatprep.mubr.f32.mxu0 0.0
  %1119 = vmatmul.mubr.f32.gmra.mxu0 %v1025
  %v1120 = vpop.f32.mrf.mxu0
  %v1121 = vadd.f32 %v993, %v1120
  %v1122 = vpop.f32.mrf.mxu0
  %1123 = vmatprep.mubr.f32.mxu0 0.0
  %1124 = vmatmul.mubr.f32.gmra.mxu0 %v1028
  %v1125 = vpop.f32.mrf.mxu0
  %v1126 = vadd.f32 %v998, %v1125
  %v1127 = vpop.f32.mrf.mxu0
  %1128 = vmatprep.mubr.f32.mxu0 0.0
  %1129 = vmatmul.mubr.f32.gmra.mxu0 %v1031
  %v1130 = vpop.f32.mrf.mxu0
  %v1131 = vadd.f32 %v1003, %v1130
  %v1132 = vpop.f32.mrf.mxu0
  %1133 = vmatprep.mubr.f32.mxu0 0.0
  %1134 = vmatmul.mubr.f32.gmra.mxu0 %v1034
  %v1135 = vpop.f32.mrf.mxu0
  %v1136 = vadd.f32 %v1008, %v1135
  %v1137 = vpop.f32.mrf.mxu0
  %1138 = vmatprep.mubr.f32.mxu0 0.0
  %1139 = vmatmul.mubr.f32.gmra.mxu0 %v1037
  %v1140 = vpop.f32.mrf.mxu0
  %v1141 = vadd.f32 %v1013, %v1140
  %v1142 = vpop.f32.mrf.mxu0
  %1143 = vdwg.mxu0
  %v1144 = vmul.f32 %v1106, 0.01
  %v1145 = vmul.f32 %v1111, 0.01
  %v1146 = vmul.f32 %v1116, 0.01
  %v1147 = vmul.f32 %v1121, 0.01
  %v1148 = vmul.f32 %v1126, 0.01
  %v1149 = vmul.f32 %v1131, 0.01
  %v1150 = vmul.f32 %v1136, 0.01
  %v1151 = vmul.f32 %v1141, 0.01
  %v1152 = vmax.f32 %v1106, %v1144
  %v1153 = vmax.f32 %v1111, %v1145
  %v1154 = vmax.f32 %v1116, %v1146
  %v1155 = vmax.f32 %v1121, %v1147
  %v1156 = vmax.f32 %v1126, %v1148
  %v1157 = vmax.f32 %v1131, %v1149
  %v1158 = vmax.f32 %v1136, %v1150
  %v1159 = vmax.f32 %v1141, %v1151
  %s1160 = scalar_lea.vmem %s6, 16
  %v1161 = vld [vmem:[%s1160] sm:$0xff]
  %v1162 = vld [vmem:[%s1160 + $0x8] sm:$0xff]
  %s1163 = scalar_lea.vmem %s7, 16
  %v1164 = vld [vmem:[%s1163] sm:$0xff]
  %v1165 = vld [vmem:[%s1163 + $0x8] sm:$0xff]
  %1167 = vset.pattern.permute.xlu0 0
  %1168 = vperm.xlu0 %1167, %v1164
  %v1169 = vpop.permute.xlu0 %1168
  %1172 = vset.pattern.permute.xlu0 0
  %1173 = vperm.xlu0 %1172, %v1165
  %v1174 = vpop.permute.xlu0 %1173
  %v1177 = vsel %vm500, %v1161, 0
  %v1180 = vsel %vm500, %v1162, 0
  %1182 = vmatprep.subr.mxu0 0.0
  %1183 = vmatpush1.msra.mxu0 0.0
  %1184 = vmatprep.subr.mxu0 0.0
  %1185 = vmatpush1.msra.mxu0 0.0
  %1186 = vmatprep.subr.mxu0 0.0
  %1187 = vmatpush1.msra.mxu0 0.0
  %1188 = vmatprep.subr.mxu0 0.0
  %1189 = vmatpush1.msra.mxu0 0.0
  %1190 = vmatprep.subr.mxu0 0.0
  %1191 = vmatpush1.msra.mxu0 0.0
  %1192 = vmatprep.subr.mxu0 0.0
  %1193 = vmatpush1.msra.mxu0 0.0
  %1194 = vmatprep.subr.mxu0 0.0
  %1195 = vmatpush1.msra.mxu0 0.0
  %1196 = vmatprep.subr.mxu0 0.0
  %1197 = vmatpush1.msra.mxu0 0.0
  %1198 = vmatprep.subr.mxu0 0.0
  %1199 = vmatpush1.msra.mxu0 %v1159
  %1200 = vmatprep.subr.mxu0 0.0
  %1201 = vmatpush1.msra.mxu0 %v1158
  %1202 = vmatprep.subr.mxu0 0.0
  %1203 = vmatpush1.msra.mxu0 %v1157
  %1204 = vmatprep.subr.mxu0 0.0
  %1205 = vmatpush1.msra.mxu0 %v1156
  %1206 = vmatprep.subr.mxu0 0.0
  %1207 = vmatpush1.msra.mxu0 %v1155
  %1208 = vmatprep.subr.mxu0 0.0
  %1209 = vmatpush1.msra.mxu0 %v1154
  %1210 = vmatprep.subr.mxu0 0.0
  %1211 = vmatpush1.msra.mxu0 %v1153
  %1212 = vmatprep.subr.mxu0 0.0
  %1213 = vmatpush1.msra.mxu0 %v1152
  %1214 = vmatprep.subr.mxu0 0.0
  %1215 = vmatpush2.msra.mxu0 0.0
  %1216 = vmatprep.subr.mxu0 0.0
  %1217 = vmatpush2.msra.mxu0 0.0
  %1218 = vmatprep.subr.mxu0 0.0
  %1219 = vmatpush2.msra.mxu0 0.0
  %1220 = vmatprep.subr.mxu0 0.0
  %1221 = vmatpush2.msra.mxu0 0.0
  %1222 = vmatprep.subr.mxu0 0.0
  %1223 = vmatpush2.msra.mxu0 0.0
  %1224 = vmatprep.subr.mxu0 0.0
  %1225 = vmatpush2.msra.mxu0 0.0
  %1226 = vmatprep.subr.mxu0 0.0
  %1227 = vmatpush2.msra.mxu0 0.0
  %1228 = vmatprep.subr.mxu0 0.0
  %1229 = vmatpush2.msra.mxu0 0.0
  %1230 = vmatprep.subr.mxu0 0.0
  %1231 = vmatpush2.msra.mxu0 0.0
  %1232 = vmatprep.subr.mxu0 0.0
  %1233 = vmatpush2.msra.mxu0 0.0
  %1234 = vmatprep.subr.mxu0 0.0
  %1235 = vmatpush2.msra.mxu0 0.0
  %1236 = vmatprep.subr.mxu0 0.0
  %1237 = vmatpush2.msra.mxu0 0.0
  %1238 = vmatprep.subr.mxu0 0.0
  %1239 = vmatpush2.msra.mxu0 0.0
  %1240 = vmatprep.subr.mxu0 0.0
  %1241 = vmatpush2.msra.mxu0 0.0
  %1242 = vmatprep.subr.mxu0 0.0
  %1243 = vmatpush2.msra.mxu0 0.0
  %1244 = vmatprep.subr.mxu0 0.0
  %1245 = vmatpush2.msra.mxu0 0.0
  %1246 = vmatprep.mubr.f32.mxu0 0.0
  %1247 = vmatmul.mubr.f32.gmra.mxu0 %v1177
  %v1248 = vpop.f32.mrf.mxu0
  %v1249 = vadd.f32 %v1169, %v1248
  %v1250 = vpop.f32.mrf.mxu0
  %1251 = vmatprep.mubr.f32.mxu0 0.0
  %1252 = vmatmul.mubr.f32.gmra.mxu0 %v1180
  %v1253 = vpop.f32.mrf.mxu0
  %v1254 = vadd.f32 %v1174, %v1253
  %v1255 = vpop.f32.mrf.mxu0
  %1256 = vdwg.mxu0
  %v1257 = vmul.f32 %v1249, 1.442695
  %v1258 = vpow.pop %v1257
  %v1259 = vmul.f32 %v1258, %v165
  %v1260 = vadd.f32 %v1259, %v1254
  %v1261 = vrot.slane %v1249, 4
  %v1262 = vadd.f32 %v1249, %v1261
  %v1263 = vrot.slane %v1262, 2
  %v1264 = vadd.f32 %v1262, %v1263
  %v1265 = vrot.slane %v1264, 1
  %v1266 = vadd.f32 %v1264, %v1265
  %v1267 = vadd.f32 %v751, %v1266
  %1268 = vst [vmem:[%s8 + $0x10] sm:$0xff] %v1260
  %1269 = vst [vmem:[%s8 + $0x18] sm:$0xff] %v744
  %s1270 = scalar_lea.vmem %s2, 128
  %v1271 = vld [vmem:[%s1270] sm:$0xff]
  %v1272 = vld [vmem:[%s1270 + $0x8] sm:$0xff]
  %v1273 = vld [vmem:[%s1270 + $0x10] sm:$0xff]
  %v1274 = vld [vmem:[%s1270 + $0x18] sm:$0xff]
  %v1275 = vld [vmem:[%s1270 + $0x20] sm:$0xff]
  %v1276 = vld [vmem:[%s1270 + $0x28] sm:$0xff]
  %v1277 = vld [vmem:[%s1270 + $0x30] sm:$0xff]
  %v1278 = vld [vmem:[%s1270 + $0x38] sm:$0xff]
  %s1279 = scalar_lea.vmem %s3, 128
  %v1280 = vld [vmem:[%s1279] sm:$0xff]
  %v1281 = vld [vmem:[%s1279 + $0x8] sm:$0xff]
  %v1282 = vld [vmem:[%s1279 + $0x10] sm:$0xff]
  %v1283 = vld [vmem:[%s1279 + $0x18] sm:$0xff]
  %v1284 = vld [vmem:[%s1279 + $0x20] sm:$0xff]
  %v1285 = vld [vmem:[%s1279 + $0x28] sm:$0xff]
  %v1286 = vld [vmem:[%s1279 + $0x30] sm:$0xff]
  %v1287 = vld [vmem:[%s1279 + $0x38] sm:$0xff]
  %1289 = vset.pattern.permute.xlu0 0
  %1290 = vperm.xlu0 %1289, %v1280
  %v1291 = vpop.permute.xlu0 %1290
  %1294 = vset.pattern.permute.xlu0 0
  %1295 = vperm.xlu0 %1294, %v1281
  %v1296 = vpop.permute.xlu0 %1295
  %1299 = vset.pattern.permute.xlu0 0
  %1300 = vperm.xlu0 %1299, %v1282
  %v1301 = vpop.permute.xlu0 %1300
  %1304 = vset.pattern.permute.xlu0 0
  %1305 = vperm.xlu0 %1304, %v1283
  %v1306 = vpop.permute.xlu0 %1305
  %1309 = vset.pattern.permute.xlu0 0
  %1310 = vperm.xlu0 %1309, %v1284
  %v1311 = vpop.permute.xlu0 %1310
  %1314 = vset.pattern.permute.xlu0 0
  %1315 = vperm.xlu0 %1314, %v1285
  %v1316 = vpop.permute.xlu0 %1315
  %1319 = vset.pattern.permute.xlu0 0
  %1320 = vperm.xlu0 %1319, %v1286
  %v1321 = vpop.permute.xlu0 %1320
  %1324 = vset.pattern.permute.xlu0 0
  %1325 = vperm.xlu0 %1324, %v1287
  %v1326 = vpop.permute.xlu0 %1325
  %v1329 = vsel %vm298, %v1271, 0
  %v1332 = vsel %vm298, %v1272, 0
  %v1335 = vsel %vm298, %v1273, 0
  %v1338 = vsel %vm298, %v1274, 0
  %v1341 = vsel %vm298, %v1275, 0
  %v1344 = vsel %vm298, %v1276, 0
  %v1347 = vsel %vm298, %v1277, 0
  %v1350 = vsel %vm298, %v1278, 0
  %1352 = vmatprep.subr.mxu0 0.0
  %1353 = vmatpush1.msra.mxu0 0.0
  %1354 = vmatprep.subr.mxu0 0.0
  %1355 = vmatpush1.msra.mxu0 0.0
  %1356 = vmatprep.subr.mxu0 0.0
  %1357 = vmatpush1.msra.mxu0 0.0
  %1358 = vmatprep.subr.mxu0 0.0
  %1359 = vmatpush1.msra.mxu0 0.0
  %1360 = vmatprep.subr.mxu0 0.0
  %1361 = vmatpush1.msra.mxu0 0.0
  %1362 = vmatprep.subr.mxu0 0.0
  %1363 = vmatpush1.msra.mxu0 0.0
  %1364 = vmatprep.subr.mxu0 0.0
  %1365 = vmatpush1.msra.mxu0 0.0
  %1366 = vmatprep.subr.mxu0 0.0
  %1367 = vmatpush1.msra.mxu0 0.0
  %1368 = vmatprep.subr.mxu0 0.0
  %1369 = vmatpush1.msra.mxu0 0.0
  %1370 = vmatprep.subr.mxu0 0.0
  %1371 = vmatpush1.msra.mxu0 0.0
  %1372 = vmatprep.subr.mxu0 0.0
  %1373 = vmatpush1.msra.mxu0 0.0
  %1374 = vmatprep.subr.mxu0 0.0
  %1375 = vmatpush1.msra.mxu0 0.0
  %1376 = vmatprep.subr.mxu0 0.0
  %1377 = vmatpush1.msra.mxu0 0.0
  %1378 = vmatprep.subr.mxu0 0.0
  %1379 = vmatpush1.msra.mxu0 0.0
  %1380 = vmatprep.subr.mxu0 0.0
  %1381 = vmatpush1.msra.mxu0 0.0
  %1382 = vmatprep.subr.mxu0 0.0
  %1383 = vmatpush1.msra.mxu0 %v1260
  %1384 = vmatprep.subr.mxu0 0.0
  %1385 = vmatpush2.msra.mxu0 0.0
  %1386 = vmatprep.subr.mxu0 0.0
  %1387 = vmatpush2.msra.mxu0 0.0
  %1388 = vmatprep.subr.mxu0 0.0
  %1389 = vmatpush2.msra.mxu0 0.0
  %1390 = vmatprep.subr.mxu0 0.0
  %1391 = vmatpush2.msra.mxu0 0.0
  %1392 = vmatprep.subr.mxu0 0.0
  %1393 = vmatpush2.msra.mxu0 0.0
  %1394 = vmatprep.subr.mxu0 0.0
  %1395 = vmatpush2.msra.mxu0 0.0
  %1396 = vmatprep.subr.mxu0 0.0
  %1397 = vmatpush2.msra.mxu0 0.0
  %1398 = vmatprep.subr.mxu0 0.0
  %1399 = vmatpush2.msra.mxu0 0.0
  %1400 = vmatprep.subr.mxu0 0.0
  %1401 = vmatpush2.msra.mxu0 0.0
  %1402 = vmatprep.subr.mxu0 0.0
  %1403 = vmatpush2.msra.mxu0 0.0
  %1404 = vmatprep.subr.mxu0 0.0
  %1405 = vmatpush2.msra.mxu0 0.0
  %1406 = vmatprep.subr.mxu0 0.0
  %1407 = vmatpush2.msra.mxu0 0.0
  %1408 = vmatprep.subr.mxu0 0.0
  %1409 = vmatpush2.msra.mxu0 0.0
  %1410 = vmatprep.subr.mxu0 0.0
  %1411 = vmatpush2.msra.mxu0 0.0
  %1412 = vmatprep.subr.mxu0 0.0
  %1413 = vmatpush2.msra.mxu0 0.0
  %1414 = vmatprep.subr.mxu0 0.0
  %1415 = vmatpush2.msra.mxu0 0.0
  %1416 = vmatprep.mubr.f32.mxu0 0.0
  %1417 = vmatmul.mubr.f32.gmra.mxu0 %v1329
  %v1418 = vpop.f32.mrf.mxu0
  %v1419 = vadd.f32 %v1291, %v1418
  %v1420 = vpop.f32.mrf.mxu0
  %1421 = vmatprep.mubr.f32.mxu0 0.0
  %1422 = vmatmul.mubr.f32.gmra.mxu0 %v1332
  %v1423 = vpop.f32.mrf.mxu0
  %v1424 = vadd.f32 %v1296, %v1423
  %v1425 = vpop.f32.mrf.mxu0
  %1426 = vmatprep.mubr.f32.mxu0 0.0
  %1427 = vmatmul.mubr.f32.gmra.mxu0 %v1335
  %v1428 = vpop.f32.mrf.mxu0
  %v1429 = vadd.f32 %v1301, %v1428
  %v1430 = vpop.f32.mrf.mxu0
  %1431 = vmatprep.mubr.f32.mxu0 0.0
  %1432 = vmatmul.mubr.f32.gmra.mxu0 %v1338
  %v1433 = vpop.f32.mrf.mxu0
  %v1434 = vadd.f32 %v1306, %v1433
  %v1435 = vpop.f32.mrf.mxu0
  %1436 = vmatprep.mubr.f32.mxu0 0.0
  %1437 = vmatmul.mubr.f32.gmra.mxu0 %v1341
  %v1438 = vpop.f32.mrf.mxu0
  %v1439 = vadd.f32 %v1311, %v1438
  %v1440 = vpop.f32.mrf.mxu0
  %1441 = vmatprep.mubr.f32.mxu0 0.0
  %1442 = vmatmul.mubr.f32.gmra.mxu0 %v1344
  %v1443 = vpop.f32.mrf.mxu0
  %v1444 = vadd.f32 %v1316, %v1443
  %v1445 = vpop.f32.mrf.mxu0
  %1446 = vmatprep.mubr.f32.mxu0 0.0
  %1447 = vmatmul.mubr.f32.gmra.mxu0 %v1347
  %v1448 = vpop.f32.mrf.mxu0
  %v1449 = vadd.f32 %v1321, %v1448
  %v1450 = vpop.f32.mrf.mxu0
  %1451 = vmatprep.mubr.f32.mxu0 0.0
  %1452 = vmatmul.mubr.f32.gmra.mxu0 %v1350
  %v1453 = vpop.f32.mrf.mxu0
  %v1454 = vadd.f32 %v1326, %v1453
  %v1455 = vpop.f32.mrf.mxu0
  %1456 = vdwg.mxu0
  %v1457 = vmul.f32 %v1419, 0.01
  %v1458 = vmul.f32 %v1424, 0.01
  %v1459 = vmul.f32 %v1429, 0.01
  %v1460 = vmul.f32 %v1434, 0.01
  %v1461 = vmul.f32 %v1439, 0.01
  %v1462 = vmul.f32 %v1444, 0.01
  %v1463 = vmul.f32 %v1449, 0.01
  %v1464 = vmul.f32 %v1454, 0.01
  %v1465 = vmax.f32 %v1419, %v1457
  %v1466 = vmax.f32 %v1424, %v1458
  %v1467 = vmax.f32 %v1429, %v1459
  %v1468 = vmax.f32 %v1434, %v1460
  %v1469 = vmax.f32 %v1439, %v1461
  %v1470 = vmax.f32 %v1444, %v1462
  %v1471 = vmax.f32 %v1449, %v1463
  %v1472 = vmax.f32 %v1454, %v1464
  %s1473 = scalar_lea.vmem %s4, 128
  %v1474 = vld [vmem:[%s1473] sm:$0xff]
  %v1475 = vld [vmem:[%s1473 + $0x8] sm:$0xff]
  %v1476 = vld [vmem:[%s1473 + $0x10] sm:$0xff]
  %v1477 = vld [vmem:[%s1473 + $0x18] sm:$0xff]
  %v1478 = vld [vmem:[%s1473 + $0x20] sm:$0xff]
  %v1479 = vld [vmem:[%s1473 + $0x28] sm:$0xff]
  %v1480 = vld [vmem:[%s1473 + $0x30] sm:$0xff]
  %v1481 = vld [vmem:[%s1473 + $0x38] sm:$0xff]
  %s1482 = scalar_lea.vmem %s5, 128
  %v1483 = vld [vmem:[%s1482] sm:$0xff]
  %v1484 = vld [vmem:[%s1482 + $0x8] sm:$0xff]
  %v1485 = vld [vmem:[%s1482 + $0x10] sm:$0xff]
  %v1486 = vld [vmem:[%s1482 + $0x18] sm:$0xff]
  %v1487 = vld [vmem:[%s1482 + $0x20] sm:$0xff]
  %v1488 = vld [vmem:[%s1482 + $0x28] sm:$0xff]
  %v1489 = vld [vmem:[%s1482 + $0x30] sm:$0xff]
  %v1490 = vld [vmem:[%s1482 + $0x38] sm:$0xff]
  %1492 = vset.pattern.permute.xlu0 0
  %1493 = vperm.xlu0 %1492, %v1483
  %v1494 = vpop.permute.xlu0 %1493
  %1497 = vset.pattern.permute.xlu0 0
  %1498 = vperm.xlu0 %1497, %v1484
  %v1499 = vpop.permute.xlu0 %1498
  %1502 = vset.pattern.permute.xlu0 0
  %1503 = vperm.xlu0 %1502, %v1485
  %v1504 = vpop.permute.xlu0 %1503
  %1507 = vset.pattern.permute.xlu0 0
  %1508 = vperm.xlu0 %1507, %v1486
  %v1509 = vpop.permute.xlu0 %1508
  %1512 = vset.pattern.permute.xlu0 0
  %1513 = vperm.xlu0 %1512, %v1487
  %v1514 = vpop.permute.xlu0 %1513
  %1517 = vset.pattern.permute.xlu0 0
  %1518 = vperm.xlu0 %1517, %v1488
  %v1519 = vpop.permute.xlu0 %1518
  %1522 = vset.pattern.permute.xlu0 0
  %1523 = vperm.xlu0 %1522, %v1489
  %v1524 = vpop.permute.xlu0 %1523
  %1527 = vset.pattern.permute.xlu0 0
  %1528 = vperm.xlu0 %1527, %v1490
  %v1529 = vpop.permute.xlu0 %1528
  %v1532 = vsel %vm500, %v1474, 0
  %v1535 = vsel %vm500, %v1475, 0
  %v1538 = vsel %vm500, %v1476, 0
  %v1541 = vsel %vm500, %v1477, 0
  %v1544 = vsel %vm500, %v1478, 0
  %v1547 = vsel %vm500, %v1479, 0
  %v1550 = vsel %vm500, %v1480, 0
  %v1553 = vsel %vm500, %v1481, 0
  %1555 = vmatprep.subr.mxu0 0.0
  %1556 = vmatpush1.msra.mxu0 0.0
  %1557 = vmatprep.subr.mxu0 0.0
  %1558 = vmatpush1.msra.mxu0 0.0
  %1559 = vmatprep.subr.mxu0 0.0
  %1560 = vmatpush1.msra.mxu0 0.0
  %1561 = vmatprep.subr.mxu0 0.0
  %1562 = vmatpush1.msra.mxu0 0.0
  %1563 = vmatprep.subr.mxu0 0.0
  %1564 = vmatpush1.msra.mxu0 0.0
  %1565 = vmatprep.subr.mxu0 0.0
  %1566 = vmatpush1.msra.mxu0 0.0
  %1567 = vmatprep.subr.mxu0 0.0
  %1568 = vmatpush1.msra.mxu0 0.0
  %1569 = vmatprep.subr.mxu0 0.0
  %1570 = vmatpush1.msra.mxu0 0.0
  %1571 = vmatprep.subr.mxu0 0.0
  %1572 = vmatpush1.msra.mxu0 %v1472
  %1573 = vmatprep.subr.mxu0 0.0
  %1574 = vmatpush1.msra.mxu0 %v1471
  %1575 = vmatprep.subr.mxu0 0.0
  %1576 = vmatpush1.msra.mxu0 %v1470
  %1577 = vmatprep.subr.mxu0 0.0
  %1578 = vmatpush1.msra.mxu0 %v1469
  %1579 = vmatprep.subr.mxu0 0.0
  %1580 = vmatpush1.msra.mxu0 %v1468
  %1581 = vmatprep.subr.mxu0 0.0
  %1582 = vmatpush1.msra.mxu0 %v1467
  %1583 = vmatprep.subr.mxu0 0.0
  %1584 = vmatpush1.msra.mxu0 %v1466
  %1585 = vmatprep.subr.mxu0 0.0
  %1586 = vmatpush1.msra.mxu0 %v1465
  %1587 = vmatprep.subr.mxu0 0.0
  %1588 = vmatpush2.msra.mxu0 0.0
  %1589 = vmatprep.subr.mxu0 0.0
  %1590 = vmatpush2.msra.mxu0 0.0
  %1591 = vmatprep.subr.mxu0 0.0
  %1592 = vmatpush2.msra.mxu0 0.0
  %1593 = vmatprep.subr.mxu0 0.0
  %1594 = vmatpush2.msra.mxu0 0.0
  %1595 = vmatprep.subr.mxu0 0.0
  %1596 = vmatpush2.msra.mxu0 0.0
  %1597 = vmatprep.subr.mxu0 0.0
  %1598 = vmatpush2.msra.mxu0 0.0
  %1599 = vmatprep.subr.mxu0 0.0
  %1600 = vmatpush2.msra.mxu0 0.0
  %1601 = vmatprep.subr.mxu0 0.0
  %1602 = vmatpush2.msra.mxu0 0.0
  %1603 = vmatprep.subr.mxu0 0.0
  %1604 = vmatpush2.msra.mxu0 0.0
  %1605 = vmatprep.subr.mxu0 0.0
  %1606 = vmatpush2.msra.mxu0 0.0
  %1607 = vmatprep.subr.mxu0 0.0
  %1608 = vmatpush2.msra.mxu0 0.0
  %1609 = vmatprep.subr.mxu0 0.0
  %1610 = vmatpush2.msra.mxu0 0.0
  %1611 = vmatprep.subr.mxu0 0.0
  %1612 = vmatpush2.msra.mxu0 0.0
  %1613 = vmatprep.subr.mxu0 0.0
  %1614 = vmatpush2.msra.mxu0 0.0
  %1615 = vmatprep.subr.mxu0 0.0
  %1616 = vmatpush2.msra.mxu0 0.0
  %1617 = vmatprep.subr.mxu0 0.0
  %1618 = vmatpush2.msra.mxu0 0.0
  %1619 = vmatprep.mubr.f32.mxu0 0.0
  %1620 = vmatmul.mubr.f32.gmra.mxu0 %v1532
  %v1621 = vpop.f32.mrf.mxu0
  %v1622 = vadd.f32 %v1494, %v1621
  %v1623 = vpop.f32.mrf.mxu0
  %1624 = vmatprep.mubr.f32.mxu0 0.0
  %1625 = vmatmul.mubr.f32.gmra.mxu0 %v1535
  %v1626 = vpop.f32.mrf.mxu0
  %v1627 = vadd.f32 %v1499, %v1626
  %v1628 = vpop.f32.mrf.mxu0
  %1629 = vmatprep.mubr.f32.mxu0 0.0
  %1630 = vmatmul.mubr.f32.gmra.mxu0 %v1538
  %v1631 = vpop.f32.mrf.mxu0
  %v1632 = vadd.f32 %v1504, %v1631
  %v1633 = vpop.f32.mrf.mxu0
  %1634 = vmatprep.mubr.f32.mxu0 0.0
  %1635 = vmatmul.mubr.f32.gmra.mxu0 %v1541
  %v1636 = vpop.f32.mrf.mxu0
  %v1637 = vadd.f32 %v1509, %v1636
  %v1638 = vpop.f32.mrf.mxu0
  %1639 = vmatprep.mubr.f32.mxu0 0.0
  %1640 = vmatmul.mubr.f32.gmra.mxu0 %v1544
  %v1641 = vpop.f32.mrf.mxu0
  %v1642 = vadd.f32 %v1514, %v1641
  %v1643 = vpop.f32.mrf.mxu0
  %1644 = vmatprep.mubr.f32.mxu0 0.0
  %1645 = vmatmul.mubr.f32.gmra.mxu0 %v1547
  %v1646 = vpop.f32.mrf.mxu0
  %v1647 = vadd.f32 %v1519, %v1646
  %v1648 = vpop.f32.mrf.mxu0
  %1649 = vmatprep.mubr.f32.mxu0 0.0
  %1650 = vmatmul.mubr.f32.gmra.mxu0 %v1550
  %v1651 = vpop.f32.mrf.mxu0
  %v1652 = vadd.f32 %v1524, %v1651
  %v1653 = vpop.f32.mrf.mxu0
  %1654 = vmatprep.mubr.f32.mxu0 0.0
  %1655 = vmatmul.mubr.f32.gmra.mxu0 %v1553
  %v1656 = vpop.f32.mrf.mxu0
  %v1657 = vadd.f32 %v1529, %v1656
  %v1658 = vpop.f32.mrf.mxu0
  %1659 = vdwg.mxu0
  %v1660 = vmul.f32 %v1622, 0.01
  %v1661 = vmul.f32 %v1627, 0.01
  %v1662 = vmul.f32 %v1632, 0.01
  %v1663 = vmul.f32 %v1637, 0.01
  %v1664 = vmul.f32 %v1642, 0.01
  %v1665 = vmul.f32 %v1647, 0.01
  %v1666 = vmul.f32 %v1652, 0.01
  %v1667 = vmul.f32 %v1657, 0.01
  %v1668 = vmax.f32 %v1622, %v1660
  %v1669 = vmax.f32 %v1627, %v1661
  %v1670 = vmax.f32 %v1632, %v1662
  %v1671 = vmax.f32 %v1637, %v1663
  %v1672 = vmax.f32 %v1642, %v1664
  %v1673 = vmax.f32 %v1647, %v1665
  %v1674 = vmax.f32 %v1652, %v1666
  %v1675 = vmax.f32 %v1657, %v1667
  %s1676 = scalar_lea.vmem %s6, 32
  %v1677 = vld [vmem:[%s1676] sm:$0xff]
  %v1678 = vld [vmem:[%s1676 + $0x8] sm:$0xff]
  %s1679 = scalar_lea.vmem %s7, 32
  %v1680 = vld [vmem:[%s1679] sm:$0xff]
  %v1681 = vld [vmem:[%s1679 + $0x8] sm:$0xff]
  %1683 = vset.pattern.permute.xlu0 0
  %1684 = vperm.xlu0 %1683, %v1680
  %v1685 = vpop.permute.xlu0 %1684
  %1688 = vset.pattern.permute.xlu0 0
  %1689 = vperm.xlu0 %1688, %v1681
  %v1690 = vpop.permute.xlu0 %1689
  %v1693 = vsel %vm500, %v1677, 0
  %v1696 = vsel %vm500, %v1678, 0
  %1698 = vmatprep.subr.mxu0 0.0
  %1699 = vmatpush1.msra.mxu0 0.0
  %1700 = vmatprep.subr.mxu0 0.0
  %1701 = vmatpush1.msra.mxu0 0.0
  %1702 = vmatprep.subr.mxu0 0.0
  %1703 = vmatpush1.msra.mxu0 0.0
  %1704 = vmatprep.subr.mxu0 0.0
  %1705 = vmatpush1.msra.mxu0 0.0
  %1706 = vmatprep.subr.mxu0 0.0
  %1707 = vmatpush1.msra.mxu0 0.0
  %1708 = vmatprep.subr.mxu0 0.0
  %1709 = vmatpush1.msra.mxu0 0.0
  %1710 = vmatprep.subr.mxu0 0.0
  %1711 = vmatpush1.msra.mxu0 0.0
  %1712 = vmatprep.subr.mxu0 0.0
  %1713 = vmatpush1.msra.mxu0 0.0
  %1714 = vmatprep.subr.mxu0 0.0
  %1715 = vmatpush1.msra.mxu0 %v1675
  %1716 = vmatprep.subr.mxu0 0.0
  %1717 = vmatpush1.msra.mxu0 %v1674
  %1718 = vmatprep.subr.mxu0 0.0
  %1719 = vmatpush1.msra.mxu0 %v1673
  %1720 = vmatprep.subr.mxu0 0.0
  %1721 = vmatpush1.msra.mxu0 %v1672
  %1722 = vmatprep.subr.mxu0 0.0
  %1723 = vmatpush1.msra.mxu0 %v1671
  %1724 = vmatprep.subr.mxu0 0.0
  %1725 = vmatpush1.msra.mxu0 %v1670
  %1726 = vmatprep.subr.mxu0 0.0
  %1727 = vmatpush1.msra.mxu0 %v1669
  %1728 = vmatprep.subr.mxu0 0.0
  %1729 = vmatpush1.msra.mxu0 %v1668
  %1730 = vmatprep.subr.mxu0 0.0
  %1731 = vmatpush2.msra.mxu0 0.0
  %1732 = vmatprep.subr.mxu0 0.0
  %1733 = vmatpush2.msra.mxu0 0.0
  %1734 = vmatprep.subr.mxu0 0.0
  %1735 = vmatpush2.msra.mxu0 0.0
  %1736 = vmatprep.subr.mxu0 0.0
  %1737 = vmatpush2.msra.mxu0 0.0
  %1738 = vmatprep.subr.mxu0 0.0
  %1739 = vmatpush2.msra.mxu0 0.0
  %1740 = vmatprep.subr.mxu0 0.0
  %1741 = vmatpush2.msra.mxu0 0.0
  %1742 = vmatprep.subr.mxu0 0.0
  %1743 = vmatpush2.msra.mxu0 0.0
  %1744 = vmatprep.subr.mxu0 0.0
  %1745 = vmatpush2.msra.mxu0 0.0
  %1746 = vmatprep.subr.mxu0 0.0
  %1747 = vmatpush2.msra.mxu0 0.0
  %1748 = vmatprep.subr.mxu0 0.0
  %1749 = vmatpush2.msra.mxu0 0.0
  %1750 = vmatprep.subr.mxu0 0.0
  %1751 = vmatpush2.msra.mxu0 0.0
  %1752 = vmatprep.subr.mxu0 0.0
  %1753 = vmatpush2.msra.mxu0 0.0
  %1754 = vmatprep.subr.mxu0 0.0
  %1755 = vmatpush2.msra.mxu0 0.0
  %1756 = vmatprep.subr.mxu0 0.0
  %1757 = vmatpush2.msra.mxu0 0.0
  %1758 = vmatprep.subr.mxu0 0.0
  %1759 = vmatpush2.msra.mxu0 0.0
  %1760 = vmatprep.subr.mxu0 0.0
  %1761 = vmatpush2.msra.mxu0 0.0
  %1762 = vmatprep.mubr.f32.mxu0 0.0
  %1763 = vmatmul.mubr.f32.gmra.mxu0 %v1693
  %v1764 = vpop.f32.mrf.mxu0
  %v1765 = vadd.f32 %v1685, %v1764
  %v1766 = vpop.f32.mrf.mxu0
  %1767 = vmatprep.mubr.f32.mxu0 0.0
  %1768 = vmatmul.mubr.f32.gmra.mxu0 %v1696
  %v1769 = vpop.f32.mrf.mxu0
  %v1770 = vadd.f32 %v1690, %v1769
  %v1771 = vpop.f32.mrf.mxu0
  %1772 = vdwg.mxu0
  %v1773 = vmul.f32 %v1765, 1.442695
  %v1774 = vpow.pop %v1773
  %v1775 = vmul.f32 %v1774, %v744
  %v1776 = vadd.f32 %v1775, %v1770
  %v1777 = vrot.slane %v1765, 4
  %v1778 = vadd.f32 %v1765, %v1777
  %v1779 = vrot.slane %v1778, 2
  %v1780 = vadd.f32 %v1778, %v1779
  %v1781 = vrot.slane %v1780, 1
  %v1782 = vadd.f32 %v1780, %v1781
  %v1783 = vadd.f32 %v1267, %v1782
  %1784 = vst [vmem:[%s8 + $0x20] sm:$0xff] %v1260
  %1785 = vst [vmem:[%s8 + $0x28] sm:$0xff] %v1776
  %s1786 = scalar_lea.vmem %s2, 192
  %v1787 = vld [vmem:[%s1786] sm:$0xff]
  %v1788 = vld [vmem:[%s1786 + $0x8] sm:$0xff]
  %v1789 = vld [vmem:[%s1786 + $0x10] sm:$0xff]
  %v1790 = vld [vmem:[%s1786 + $0x18] sm:$0xff]
  %v1791 = vld [vmem:[%s1786 + $0x20] sm:$0xff]
  %v1792 = vld [vmem:[%s1786 + $0x28] sm:$0xff]
  %v1793 = vld [vmem:[%s1786 + $0x30] sm:$0xff]
  %v1794 = vld [vmem:[%s1786 + $0x38] sm:$0xff]
  %s1795 = scalar_lea.vmem %s3, 192
  %v1796 = vld [vmem:[%s1795] sm:$0xff]
  %v1797 = vld [vmem:[%s1795 + $0x8] sm:$0xff]
  %v1798 = vld [vmem:[%s1795 + $0x10] sm:$0xff]
  %v1799 = vld [vmem:[%s1795 + $0x18] sm:$0xff]
  %v1800 = vld [vmem:[%s1795 + $0x20] sm:$0xff]
  %v1801 = vld [vmem:[%s1795 + $0x28] sm:$0xff]
  %v1802 = vld [vmem:[%s1795 + $0x30] sm:$0xff]
  %v1803 = vld [vmem:[%s1795 + $0x38] sm:$0xff]
  %1805 = vset.pattern.permute.xlu0 0
  %1806 = vperm.xlu0 %1805, %v1796
  %v1807 = vpop.permute.xlu0 %1806
  %1810 = vset.pattern.permute.xlu0 0
  %1811 = vperm.xlu0 %1810, %v1797
  %v1812 = vpop.permute.xlu0 %1811
  %1815 = vset.pattern.permute.xlu0 0
  %1816 = vperm.xlu0 %1815, %v1798
  %v1817 = vpop.permute.xlu0 %1816
  %1820 = vset.pattern.permute.xlu0 0
  %1821 = vperm.xlu0 %1820, %v1799
  %v1822 = vpop.permute.xlu0 %1821
  %1825 = vset.pattern.permute.xlu0 0
  %1826 = vperm.xlu0 %1825, %v1800
  %v1827 = vpop.permute.xlu0 %1826
  %1830 = vset.pattern.permute.xlu0 0
  %1831 = vperm.xlu0 %1830, %v1801
  %v1832 = vpop.permute.xlu0 %1831
  %1835 = vset.pattern.permute.xlu0 0
  %1836 = vperm.xlu0 %1835, %v1802
  %v1837 = vpop.permute.xlu0 %1836
  %1840 = vset.pattern.permute.xlu0 0
  %1841 = vperm.xlu0 %1840, %v1803
  %v1842 = vpop.permute.xlu0 %1841
  %v1845 = vsel %vm298, %v1787, 0
  %v1848 = vsel %vm298, %v1788, 0
  %v1851 = vsel %vm298, %v1789, 0
  %v1854 = vsel %vm298, %v1790, 0
  %v1857 = vsel %vm298, %v1791, 0
  %v1860 = vsel %vm298, %v1792, 0
  %v1863 = vsel %vm298, %v1793, 0
  %v1866 = vsel %vm298, %v1794, 0
  %1868 = vmatprep.subr.mxu0 0.0
  %1869 = vmatpush1.msra.mxu0 0.0
  %1870 = vmatprep.subr.mxu0 0.0
  %1871 = vmatpush1.msra.mxu0 0.0
  %1872 = vmatprep.subr.mxu0 0.0
  %1873 = vmatpush1.msra.mxu0 0.0
  %1874 = vmatprep.subr.mxu0 0.0
  %1875 = vmatpush1.msra.mxu0 0.0
  %1876 = vmatprep.subr.mxu0 0.0
  %1877 = vmatpush1.msra.mxu0 0.0
  %1878 = vmatprep.subr.mxu0 0.0
  %1879 = vmatpush1.msra.mxu0 0.0
  %1880 = vmatprep.subr.mxu0 0.0
  %1881 = vmatpush1.msra.mxu0 0.0
  %1882 = vmatprep.subr.mxu0 0.0
  %1883 = vmatpush1.msra.mxu0 0.0
  %1884 = vmatprep.subr.mxu0 0.0
  %1885 = vmatpush1.msra.mxu0 0.0
  %1886 = vmatprep.subr.mxu0 0.0
  %1887 = vmatpush1.msra.mxu0 0.0
  %1888 = vmatprep.subr.mxu0 0.0
  %1889 = vmatpush1.msra.mxu0 0.0
  %1890 = vmatprep.subr.mxu0 0.0
  %1891 = vmatpush1.msra.mxu0 0.0
  %1892 = vmatprep.subr.mxu0 0.0
  %1893 = vmatpush1.msra.mxu0 0.0
  %1894 = vmatprep.subr.mxu0 0.0
  %1895 = vmatpush1.msra.mxu0 0.0
  %1896 = vmatprep.subr.mxu0 0.0
  %1897 = vmatpush1.msra.mxu0 0.0
  %1898 = vmatprep.subr.mxu0 0.0
  %1899 = vmatpush1.msra.mxu0 %v1776
  %1900 = vmatprep.subr.mxu0 0.0
  %1901 = vmatpush2.msra.mxu0 0.0
  %1902 = vmatprep.subr.mxu0 0.0
  %1903 = vmatpush2.msra.mxu0 0.0
  %1904 = vmatprep.subr.mxu0 0.0
  %1905 = vmatpush2.msra.mxu0 0.0
  %1906 = vmatprep.subr.mxu0 0.0
  %1907 = vmatpush2.msra.mxu0 0.0
  %1908 = vmatprep.subr.mxu0 0.0
  %1909 = vmatpush2.msra.mxu0 0.0
  %1910 = vmatprep.subr.mxu0 0.0
  %1911 = vmatpush2.msra.mxu0 0.0
  %1912 = vmatprep.subr.mxu0 0.0
  %1913 = vmatpush2.msra.mxu0 0.0
  %1914 = vmatprep.subr.mxu0 0.0
  %1915 = vmatpush2.msra.mxu0 0.0
  %1916 = vmatprep.subr.mxu0 0.0
  %1917 = vmatpush2.msra.mxu0 0.0
  %1918 = vmatprep.subr.mxu0 0.0
  %1919 = vmatpush2.msra.mxu0 0.0
  %1920 = vmatprep.subr.mxu0 0.0
  %1921 = vmatpush2.msra.mxu0 0.0
  %1922 = vmatprep.subr.mxu0 0.0
  %1923 = vmatpush2.msra.mxu0 0.0
  %1924 = vmatprep.subr.mxu0 0.0
  %1925 = vmatpush2.msra.mxu0 0.0
  %1926 = vmatprep.subr.mxu0 0.0
  %1927 = vmatpush2.msra.mxu0 0.0
  %1928 = vmatprep.subr.mxu0 0.0
  %1929 = vmatpush2.msra.mxu0 0.0
  %1930 = vmatprep.subr.mxu0 0.0
  %1931 = vmatpush2.msra.mxu0 0.0
  %1932 = vmatprep.mubr.f32.mxu0 0.0
  %1933 = vmatmul.mubr.f32.gmra.mxu0 %v1845
  %v1934 = vpop.f32.mrf.mxu0
  %v1935 = vadd.f32 %v1807, %v1934
  %v1936 = vpop.f32.mrf.mxu0
  %1937 = vmatprep.mubr.f32.mxu0 0.0
  %1938 = vmatmul.mubr.f32.gmra.mxu0 %v1848
  %v1939 = vpop.f32.mrf.mxu0
  %v1940 = vadd.f32 %v1812, %v1939
  %v1941 = vpop.f32.mrf.mxu0
  %1942 = vmatprep.mubr.f32.mxu0 0.0
  %1943 = vmatmul.mubr.f32.gmra.mxu0 %v1851
  %v1944 = vpop.f32.mrf.mxu0
  %v1945 = vadd.f32 %v1817, %v1944
  %v1946 = vpop.f32.mrf.mxu0
  %1947 = vmatprep.mubr.f32.mxu0 0.0
  %1948 = vmatmul.mubr.f32.gmra.mxu0 %v1854
  %v1949 = vpop.f32.mrf.mxu0
  %v1950 = vadd.f32 %v1822, %v1949
  %v1951 = vpop.f32.mrf.mxu0
  %1952 = vmatprep.mubr.f32.mxu0 0.0
  %1953 = vmatmul.mubr.f32.gmra.mxu0 %v1857
  %v1954 = vpop.f32.mrf.mxu0
  %v1955 = vadd.f32 %v1827, %v1954
  %v1956 = vpop.f32.mrf.mxu0
  %1957 = vmatprep.mubr.f32.mxu0 0.0
  %1958 = vmatmul.mubr.f32.gmra.mxu0 %v1860
  %v1959 = vpop.f32.mrf.mxu0
  %v1960 = vadd.f32 %v1832, %v1959
  %v1961 = vpop.f32.mrf.mxu0
  %1962 = vmatprep.mubr.f32.mxu0 0.0
  %1963 = vmatmul.mubr.f32.gmra.mxu0 %v1863
  %v1964 = vpop.f32.mrf.mxu0
  %v1965 = vadd.f32 %v1837, %v1964
  %v1966 = vpop.f32.mrf.mxu0
  %1967 = vmatprep.mubr.f32.mxu0 0.0
  %1968 = vmatmul.mubr.f32.gmra.mxu0 %v1866
  %v1969 = vpop.f32.mrf.mxu0
  %v1970 = vadd.f32 %v1842, %v1969
  %v1971 = vpop.f32.mrf.mxu0
  %1972 = vdwg.mxu0
  %v1973 = vmul.f32 %v1935, 0.01
  %v1974 = vmul.f32 %v1940, 0.01
  %v1975 = vmul.f32 %v1945, 0.01
  %v1976 = vmul.f32 %v1950, 0.01
  %v1977 = vmul.f32 %v1955, 0.01
  %v1978 = vmul.f32 %v1960, 0.01
  %v1979 = vmul.f32 %v1965, 0.01
  %v1980 = vmul.f32 %v1970, 0.01
  %v1981 = vmax.f32 %v1935, %v1973
  %v1982 = vmax.f32 %v1940, %v1974
  %v1983 = vmax.f32 %v1945, %v1975
  %v1984 = vmax.f32 %v1950, %v1976
  %v1985 = vmax.f32 %v1955, %v1977
  %v1986 = vmax.f32 %v1960, %v1978
  %v1987 = vmax.f32 %v1965, %v1979
  %v1988 = vmax.f32 %v1970, %v1980
  %s1989 = scalar_lea.vmem %s4, 192
  %v1990 = vld [vmem:[%s1989] sm:$0xff]
  %v1991 = vld [vmem:[%s1989 + $0x8] sm:$0xff]
  %v1992 = vld [vmem:[%s1989 + $0x10] sm:$0xff]
  %v1993 = vld [vmem:[%s1989 + $0x18] sm:$0xff]
  %v1994 = vld [vmem:[%s1989 + $0x20] sm:$0xff]
  %v1995 = vld [vmem:[%s1989 + $0x28] sm:$0xff]
  %v1996 = vld [vmem:[%s1989 + $0x30] sm:$0xff]
  %v1997 = vld [vmem:[%s1989 + $0x38] sm:$0xff]
  %s1998 = scalar_lea.vmem %s5, 192
  %v1999 = vld [vmem:[%s1998] sm:$0xff]
  %v2000 = vld [vmem:[%s1998 + $0x8] sm:$0xff]
  %v2001 = vld [vmem:[%s1998 + $0x10] sm:$0xff]
  %v2002 = vld [vmem:[%s1998 + $0x18] sm:$0xff]
  %v2003 = vld [vmem:[%s1998 + $0x20] sm:$0xff]
  %v2004 = vld [vmem:[%s1998 + $0x28] sm:$0xff]
  %v2005 = vld [vmem:[%s1998 + $0x30] sm:$0xff]
  %v2006 = vld [vmem:[%s1998 + $0x38] sm:$0xff]
  %2008 = vset.pattern.permute.xlu0 0
  %2009 = vperm.xlu0 %2008, %v1999
  %v2010 = vpop.permute.xlu0 %2009
  %2013 = vset.pattern.permute.xlu0 0
  %2014 = vperm.xlu0 %2013, %v2000
  %v2015 = vpop.permute.xlu0 %2014
  %2018 = vset.pattern.permute.xlu0 0
  %2019 = vperm.xlu0 %2018, %v2001
  %v2020 = vpop.permute.xlu0 %2019
  %2023 = vset.pattern.permute.xlu0 0
  %2024 = vperm.xlu0 %2023, %v2002
  %v2025 = vpop.permute.xlu0 %2024
  %2028 = vset.pattern.permute.xlu0 0
  %2029 = vperm.xlu0 %2028, %v2003
  %v2030 = vpop.permute.xlu0 %2029
  %2033 = vset.pattern.permute.xlu0 0
  %2034 = vperm.xlu0 %2033, %v2004
  %v2035 = vpop.permute.xlu0 %2034
  %2038 = vset.pattern.permute.xlu0 0
  %2039 = vperm.xlu0 %2038, %v2005
  %v2040 = vpop.permute.xlu0 %2039
  %2043 = vset.pattern.permute.xlu0 0
  %2044 = vperm.xlu0 %2043, %v2006
  %v2045 = vpop.permute.xlu0 %2044
  %v2048 = vsel %vm500, %v1990, 0
  %v2051 = vsel %vm500, %v1991, 0
  %v2054 = vsel %vm500, %v1992, 0
  %v2057 = vsel %vm500, %v1993, 0
  %v2060 = vsel %vm500, %v1994, 0
  %v2063 = vsel %vm500, %v1995, 0
  %v2066 = vsel %vm500, %v1996, 0
  %v2069 = vsel %vm500, %v1997, 0
  %2071 = vmatprep.subr.mxu0 0.0
  %2072 = vmatpush1.msra.mxu0 0.0
  %2073 = vmatprep.subr.mxu0 0.0
  %2074 = vmatpush1.msra.mxu0 0.0
  %2075 = vmatprep.subr.mxu0 0.0
  %2076 = vmatpush1.msra.mxu0 0.0
  %2077 = vmatprep.subr.mxu0 0.0
  %2078 = vmatpush1.msra.mxu0 0.0
  %2079 = vmatprep.subr.mxu0 0.0
  %2080 = vmatpush1.msra.mxu0 0.0
  %2081 = vmatprep.subr.mxu0 0.0
  %2082 = vmatpush1.msra.mxu0 0.0
  %2083 = vmatprep.subr.mxu0 0.0
  %2084 = vmatpush1.msra.mxu0 0.0
  %2085 = vmatprep.subr.mxu0 0.0
  %2086 = vmatpush1.msra.mxu0 0.0
  %2087 = vmatprep.subr.mxu0 0.0
  %2088 = vmatpush1.msra.mxu0 %v1988
  %2089 = vmatprep.subr.mxu0 0.0
  %2090 = vmatpush1.msra.mxu0 %v1987
  %2091 = vmatprep.subr.mxu0 0.0
  %2092 = vmatpush1.msra.mxu0 %v1986
  %2093 = vmatprep.subr.mxu0 0.0
  %2094 = vmatpush1.msra.mxu0 %v1985
  %2095 = vmatprep.subr.mxu0 0.0
  %2096 = vmatpush1.msra.mxu0 %v1984
  %2097 = vmatprep.subr.mxu0 0.0
  %2098 = vmatpush1.msra.mxu0 %v1983
  %2099 = vmatprep.subr.mxu0 0.0
  %2100 = vmatpush1.msra.mxu0 %v1982
  %2101 = vmatprep.subr.mxu0 0.0
  %2102 = vmatpush1.msra.mxu0 %v1981
  %2103 = vmatprep.subr.mxu0 0.0
  %2104 = vmatpush2.msra.mxu0 0.0
  %2105 = vmatprep.subr.mxu0 0.0
  %2106 = vmatpush2.msra.mxu0 0.0
  %2107 = vmatprep.subr.mxu0 0.0
  %2108 = vmatpush2.msra.mxu0 0.0
  %2109 = vmatprep.subr.mxu0 0.0
  %2110 = vmatpush2.msra.mxu0 0.0
  %2111 = vmatprep.subr.mxu0 0.0
  %2112 = vmatpush2.msra.mxu0 0.0
  %2113 = vmatprep.subr.mxu0 0.0
  %2114 = vmatpush2.msra.mxu0 0.0
  %2115 = vmatprep.subr.mxu0 0.0
  %2116 = vmatpush2.msra.mxu0 0.0
  %2117 = vmatprep.subr.mxu0 0.0
  %2118 = vmatpush2.msra.mxu0 0.0
  %2119 = vmatprep.subr.mxu0 0.0
  %2120 = vmatpush2.msra.mxu0 0.0
  %2121 = vmatprep.subr.mxu0 0.0
  %2122 = vmatpush2.msra.mxu0 0.0
  %2123 = vmatprep.subr.mxu0 0.0
  %2124 = vmatpush2.msra.mxu0 0.0
  %2125 = vmatprep.subr.mxu0 0.0
  %2126 = vmatpush2.msra.mxu0 0.0
  %2127 = vmatprep.subr.mxu0 0.0
  %2128 = vmatpush2.msra.mxu0 0.0
  %2129 = vmatprep.subr.mxu0 0.0
  %2130 = vmatpush2.msra.mxu0 0.0
  %2131 = vmatprep.subr.mxu0 0.0
  %2132 = vmatpush2.msra.mxu0 0.0
  %2133 = vmatprep.subr.mxu0 0.0
  %2134 = vmatpush2.msra.mxu0 0.0
  %2135 = vmatprep.mubr.f32.mxu0 0.0
  %2136 = vmatmul.mubr.f32.gmra.mxu0 %v2048
  %v2137 = vpop.f32.mrf.mxu0
  %v2138 = vadd.f32 %v2010, %v2137
  %v2139 = vpop.f32.mrf.mxu0
  %2140 = vmatprep.mubr.f32.mxu0 0.0
  %2141 = vmatmul.mubr.f32.gmra.mxu0 %v2051
  %v2142 = vpop.f32.mrf.mxu0
  %v2143 = vadd.f32 %v2015, %v2142
  %v2144 = vpop.f32.mrf.mxu0
  %2145 = vmatprep.mubr.f32.mxu0 0.0
  %2146 = vmatmul.mubr.f32.gmra.mxu0 %v2054
  %v2147 = vpop.f32.mrf.mxu0
  %v2148 = vadd.f32 %v2020, %v2147
  %v2149 = vpop.f32.mrf.mxu0
  %2150 = vmatprep.mubr.f32.mxu0 0.0
  %2151 = vmatmul.mubr.f32.gmra.mxu0 %v2057
  %v2152 = vpop.f32.mrf.mxu0
  %v2153 = vadd.f32 %v2025, %v2152
  %v2154 = vpop.f32.mrf.mxu0
  %2155 = vmatprep.mubr.f32.mxu0 0.0
  %2156 = vmatmul.mubr.f32.gmra.mxu0 %v2060
  %v2157 = vpop.f32.mrf.mxu0
  %v2158 = vadd.f32 %v2030, %v2157
  %v2159 = vpop.f32.mrf.mxu0
  %2160 = vmatprep.mubr.f32.mxu0 0.0
  %2161 = vmatmul.mubr.f32.gmra.mxu0 %v2063
  %v2162 = vpop.f32.mrf.mxu0
  %v2163 = vadd.f32 %v2035, %v2162
  %v2164 = vpop.f32.mrf.mxu0
  %2165 = vmatprep.mubr.f32.mxu0 0.0
  %2166 = vmatmul.mubr.f32.gmra.mxu0 %v2066
  %v2167 = vpop.f32.mrf.mxu0
  %v2168 = vadd.f32 %v2040, %v2167
  %v2169 = vpop.f32.mrf.mxu0
  %2170 = vmatprep.mubr.f32.mxu0 0.0
  %2171 = vmatmul.mubr.f32.gmra.mxu0 %v2069
  %v2172 = vpop.f32.mrf.mxu0
  %v2173 = vadd.f32 %v2045, %v2172
  %v2174 = vpop.f32.mrf.mxu0
  %2175 = vdwg.mxu0
  %v2176 = vmul.f32 %v2138, 0.01
  %v2177 = vmul.f32 %v2143, 0.01
  %v2178 = vmul.f32 %v2148, 0.01
  %v2179 = vmul.f32 %v2153, 0.01
  %v2180 = vmul.f32 %v2158, 0.01
  %v2181 = vmul.f32 %v2163, 0.01
  %v2182 = vmul.f32 %v2168, 0.01
  %v2183 = vmul.f32 %v2173, 0.01
  %v2184 = vmax.f32 %v2138, %v2176
  %v2185 = vmax.f32 %v2143, %v2177
  %v2186 = vmax.f32 %v2148, %v2178
  %v2187 = vmax.f32 %v2153, %v2179
  %v2188 = vmax.f32 %v2158, %v2180
  %v2189 = vmax.f32 %v2163, %v2181
  %v2190 = vmax.f32 %v2168, %v2182
  %v2191 = vmax.f32 %v2173, %v2183
  %s2192 = scalar_lea.vmem %s6, 48
  %v2193 = vld [vmem:[%s2192] sm:$0xff]
  %v2194 = vld [vmem:[%s2192 + $0x8] sm:$0xff]
  %s2195 = scalar_lea.vmem %s7, 48
  %v2196 = vld [vmem:[%s2195] sm:$0xff]
  %v2197 = vld [vmem:[%s2195 + $0x8] sm:$0xff]
  %2199 = vset.pattern.permute.xlu0 0
  %2200 = vperm.xlu0 %2199, %v2196
  %v2201 = vpop.permute.xlu0 %2200
  %2204 = vset.pattern.permute.xlu0 0
  %2205 = vperm.xlu0 %2204, %v2197
  %v2206 = vpop.permute.xlu0 %2205
  %v2209 = vsel %vm500, %v2193, 0
  %v2212 = vsel %vm500, %v2194, 0
  %2214 = vmatprep.subr.mxu0 0.0
  %2215 = vmatpush1.msra.mxu0 0.0
  %2216 = vmatprep.subr.mxu0 0.0
  %2217 = vmatpush1.msra.mxu0 0.0
  %2218 = vmatprep.subr.mxu0 0.0
  %2219 = vmatpush1.msra.mxu0 0.0
  %2220 = vmatprep.subr.mxu0 0.0
  %2221 = vmatpush1.msra.mxu0 0.0
  %2222 = vmatprep.subr.mxu0 0.0
  %2223 = vmatpush1.msra.mxu0 0.0
  %2224 = vmatprep.subr.mxu0 0.0
  %2225 = vmatpush1.msra.mxu0 0.0
  %2226 = vmatprep.subr.mxu0 0.0
  %2227 = vmatpush1.msra.mxu0 0.0
  %2228 = vmatprep.subr.mxu0 0.0
  %2229 = vmatpush1.msra.mxu0 0.0
  %2230 = vmatprep.subr.mxu0 0.0
  %2231 = vmatpush1.msra.mxu0 %v2191
  %2232 = vmatprep.subr.mxu0 0.0
  %2233 = vmatpush1.msra.mxu0 %v2190
  %2234 = vmatprep.subr.mxu0 0.0
  %2235 = vmatpush1.msra.mxu0 %v2189
  %2236 = vmatprep.subr.mxu0 0.0
  %2237 = vmatpush1.msra.mxu0 %v2188
  %2238 = vmatprep.subr.mxu0 0.0
  %2239 = vmatpush1.msra.mxu0 %v2187
  %2240 = vmatprep.subr.mxu0 0.0
  %2241 = vmatpush1.msra.mxu0 %v2186
  %2242 = vmatprep.subr.mxu0 0.0
  %2243 = vmatpush1.msra.mxu0 %v2185
  %2244 = vmatprep.subr.mxu0 0.0
  %2245 = vmatpush1.msra.mxu0 %v2184
  %2246 = vmatprep.subr.mxu0 0.0
  %2247 = vmatpush2.msra.mxu0 0.0
  %2248 = vmatprep.subr.mxu0 0.0
  %2249 = vmatpush2.msra.mxu0 0.0
  %2250 = vmatprep.subr.mxu0 0.0
  %2251 = vmatpush2.msra.mxu0 0.0
  %2252 = vmatprep.subr.mxu0 0.0
  %2253 = vmatpush2.msra.mxu0 0.0
  %2254 = vmatprep.subr.mxu0 0.0
  %2255 = vmatpush2.msra.mxu0 0.0
  %2256 = vmatprep.subr.mxu0 0.0
  %2257 = vmatpush2.msra.mxu0 0.0
  %2258 = vmatprep.subr.mxu0 0.0
  %2259 = vmatpush2.msra.mxu0 0.0
  %2260 = vmatprep.subr.mxu0 0.0
  %2261 = vmatpush2.msra.mxu0 0.0
  %2262 = vmatprep.subr.mxu0 0.0
  %2263 = vmatpush2.msra.mxu0 0.0
  %2264 = vmatprep.subr.mxu0 0.0
  %2265 = vmatpush2.msra.mxu0 0.0
  %2266 = vmatprep.subr.mxu0 0.0
  %2267 = vmatpush2.msra.mxu0 0.0
  %2268 = vmatprep.subr.mxu0 0.0
  %2269 = vmatpush2.msra.mxu0 0.0
  %2270 = vmatprep.subr.mxu0 0.0
  %2271 = vmatpush2.msra.mxu0 0.0
  %2272 = vmatprep.subr.mxu0 0.0
  %2273 = vmatpush2.msra.mxu0 0.0
  %2274 = vmatprep.subr.mxu0 0.0
  %2275 = vmatpush2.msra.mxu0 0.0
  %2276 = vmatprep.subr.mxu0 0.0
  %2277 = vmatpush2.msra.mxu0 0.0
  %2278 = vmatprep.mubr.f32.mxu0 0.0
  %2279 = vmatmul.mubr.f32.gmra.mxu0 %v2209
  %v2280 = vpop.f32.mrf.mxu0
  %v2281 = vadd.f32 %v2201, %v2280
  %v2282 = vpop.f32.mrf.mxu0
  %2283 = vmatprep.mubr.f32.mxu0 0.0
  %2284 = vmatmul.mubr.f32.gmra.mxu0 %v2212
  %v2285 = vpop.f32.mrf.mxu0
  %v2286 = vadd.f32 %v2206, %v2285
  %v2287 = vpop.f32.mrf.mxu0
  %2288 = vdwg.mxu0
  %v2289 = vmul.f32 %v2281, 1.442695
  %v2290 = vpow.pop %v2289
  %v2291 = vmul.f32 %v2290, %v1260
  %v2292 = vadd.f32 %v2291, %v2286
  %v2293 = vrot.slane %v2281, 4
  %v2294 = vadd.f32 %v2281, %v2293
  %v2295 = vrot.slane %v2294, 2
  %v2296 = vadd.f32 %v2294, %v2295
  %v2297 = vrot.slane %v2296, 1
  %v2298 = vadd.f32 %v2296, %v2297
  %v2299 = vadd.f32 %v1783, %v2298
  %2300 = vst [vmem:[%s8 + $0x30] sm:$0xff] %v2292
  %2301 = vst [vmem:[%s8 + $0x38] sm:$0xff] %v1776
  %2302 = vst [vmem:[%s8 + $0x40] sm:$0xff] %v2299
  // Predicated region
  $region34: #{_nf_forward_jit.1} parent=0 // pred_check
    _
  $region35: #{_nf_forward_jit.1} parent=0 // pred_check_branch
    %2304 = sbr.rel (0) target = $region37
  $region36: #{_nf_forward_jit.1} parent=0 // pred_region
    _
  $region37: #{_nf_forward_jit.1} parent=0 // pred_fallthru
    _
  // Predicated region
  $region38: #{_nf_forward_jit.1} parent=0 // pred_check
    _
  $region39: #{_nf_forward_jit.1} parent=0 // pred_check_branch
    %2306 = sbr.rel (0) target = $region41
  $region40: #{_nf_forward_jit.1} parent=0 // pred_region
    _
  $region41: #{_nf_forward_jit.1} parent=0 // pred_fallthru
    _

</llo_original>
